<compile_context>
chip_gen: v7x
topology: tpu7x:2x2x1
jax: 0.10.0
libtpu: 0.0.40
codegen_flags: <defaults>
</compile_context>

<pallas_src>
import functools

import jax
import jax.numpy as jnp
from jax import lax
from jax.experimental import pallas as pl
from jax.experimental.pallas import tpu as pltpu

EPS = 1e-5
_NUM_STATS_CHUNKS = 2  # v7x has 2 TensorCores per chip; harmless on v5e/v6e.


def _cdiv(a, b):
    return -(-a // b)


# ----------------------------------------------------------------------------
# Kernel 1: per-channel sum / sum-of-squares (BatchNorm2d training-mode stats,
# biased variance over N,H,W).  Grid = (chunk ["parallel"], tile ["arbitrary"]).
# ----------------------------------------------------------------------------
def _channel_stats_kernel(x_ref, sum_ref, sq_ref, *, m_total, tiles_per_chunk):
    c = pl.program_id(0)   # megacore chunk
    i = pl.program_id(1)   # reduction step within the chunk

    @pl.when(i == 0)
    def _init():
        sum_ref[...] = jnp.zeros_like(sum_ref)
        sq_ref[...] = jnp.zeros_like(sq_ref)

    tile_m, cin = x_ref.shape
    base = (c * tiles_per_chunk + i) * tile_m
    row = base + lax.broadcasted_iota(jnp.int32, (tile_m, 1), 0)
    xv = jnp.where(row < m_total, x_ref[...].astype(jnp.float32), 0.0)

    if tile_m % 8 == 0:
        # Keep 8 per-sublane partials per channel; combined in JAX afterwards.
        xv3 = xv.reshape(tile_m // 8, 8, cin)
        sum_ref[...] += jnp.sum(xv3, axis=0)
        sq_ref[...] += jnp.sum(xv3 * xv3, axis=0)
    else:  # tiny-input fallback (tile_m == full dim, not a multiple of 8)
        sum_ref[0:1, :] += jnp.sum(xv, axis=0, keepdims=True)
        sq_ref[0:1, :] += jnp.sum(xv * xv, axis=0, keepdims=True)


def channel_stats(x2d, tile_m):
    """x2d: (M, Cin) bf16/f32 -> per-channel (sum, sumsq), each float32 (Cin,)."""
    m, cin = x2d.shape
    tile_m = int(min(tile_m, m))
    if not (tile_m == m or tile_m % 8 == 0):
        raise ValueError("stats tile must be a multiple of 8 (or equal to M)")
    total_tiles = _cdiv(m, tile_m)
    tiles_per_chunk = _cdiv(total_tiles, _NUM_STATS_CHUNKS)

    def x_map(c, i):
        # Clamp so no block starts past the end of the array; the in-kernel row
        # mask zeroes every row belonging to a clamped / tail tile.
        return (jnp.minimum(c * tiles_per_chunk + i, total_tiles - 1), 0)

    kernel = functools.partial(_channel_stats_kernel, m_total=m,
                               tiles_per_chunk=tiles_per_chunk)
    sums, sqs = pl.pallas_call(
        kernel,
        out_shape=(
            jax.ShapeDtypeStruct((_NUM_STATS_CHUNKS * 8, cin), jnp.float32),
            jax.ShapeDtypeStruct((_NUM_STATS_CHUNKS * 8, cin), jnp.float32),
        ),
        grid_spec=pltpu.PrefetchScalarGridSpec(
            num_scalar_prefetch=0,
            grid=(_NUM_STATS_CHUNKS, tiles_per_chunk),
            in_specs=[pl.BlockSpec((tile_m, cin), x_map)],
            out_specs=[
                pl.BlockSpec((8, cin), lambda c, i: (c, 0)),
                pl.BlockSpec((8, cin), lambda c, i: (c, 0)),
            ],
        ),
        compiler_params=pltpu.CompilerParams(
            dimension_semantics=("parallel", "arbitrary")),
    )(x2d)
    # Combine per-chunk / per-sublane partials explicitly in JAX.
    return jnp.sum(sums, axis=0), jnp.sum(sqs, axis=0)


# ----------------------------------------------------------------------------
# Kernel 2: fused BatchNorm(affine) + ReLU + ConvTranspose2d(k2,s2) as a
# per-pixel matmul + bias + NHWC 2x2 scatter + channel-concat with skip.
# Output array (N*H, 2, W, 2*(Cout+Cskip)) is a row-major view of the NHWC
# result (N, 2H, 2W, Cout+Cskip).
# ----------------------------------------------------------------------------
def _bn_relu_deconv_concat_kernel(x_ref, scale_ref, shift_ref, w_ref, b_ref,
                                  skip_ref, o_ref, *, total_rows):
    rows, w_pix, cin = x_ref.shape
    cout = b_ref.shape[1] // 4
    cskip = skip_ref.shape[3] // 2

    t = pl.program_id(0)
    row = t * rows + lax.broadcasted_iota(jnp.int32, (rows, 1, 1), 0)
    valid = row < total_rows                              # tail-row mask

    xv = jnp.where(valid, x_ref[...].astype(jnp.float32), 0.0)
    xn = xv * scale_ref[...] + shift_ref[...]             # BN in f32
    xr = jnp.maximum(xn, 0.0).astype(jnp.bfloat16)        # ReLU, bf16 to MXU
    xr2 = xr.reshape(rows * w_pix, cin)

    # Weight columns ordered (ki, kj, cout); f32 accumulation on the MXU.
    y = jnp.dot(xr2, w_ref[...], preferred_element_type=jnp.float32)
    y = (y + b_ref[...]).reshape(rows, w_pix, 4 * cout)

    for ki in range(2):                                   # output row parity 2i+ki
        yk = y[:, :, ki * 2 * cout:(ki + 1) * 2 * cout]   # (rows, W, 2*Cout): (kj, co)
        sj = skip_ref[:, ki, :, :].astype(jnp.float32)    # (rows, W, 2*Cskip): (kj, cs)
        # Interleave deconv channels and skip channels per kj so the stored row
        # is exactly the NHWC row (..., 2j+kj, [y | skip]) -- one dense store.
        rowk = jnp.concatenate(
            [yk[:, :, :cout], sj[:, :, :cskip],
             yk[:, :, cout:], sj[:, :, cskip:]], axis=-1)
        o_ref[:, ki, :, :] = rowk.astype(o_ref.dtype)


def bn_relu_deconv_concat(x3, scale, shift, w_perm, bias_perm, skip4,
                          rows_per_tile):
    p, w_pix, cin = x3.shape
    cout = bias_perm.shape[1] // 4
    cskip = skip4.shape[3] // 2
    c_total2 = 2 * (cout + cskip)
    rows_per_tile = max(1, int(min(rows_per_tile, p)))
    n_tiles = _cdiv(p, rows_per_tile)

    # VMEM budget: double-buffered x/skip/out tiles + resident weights.
    tile_bytes = (2 * rows_per_tile * w_pix * cin * 2
                  + 2 * rows_per_tile * 2 * w_pix * 2 * cskip * 4
                  + 2 * rows_per_tile * 2 * w_pix * c_total2 * 4
                  + w_perm.size * 2 + bias_perm.size * 4 + 2 * cin * 4 * 2)
    vmem_limit = int(min(64 * 1024 * 1024,
                         max(32 * 1024 * 1024, 6 * tile_bytes)))

    kernel = functools.partial(_bn_relu_deconv_concat_kernel, total_rows=p)
    return pl.pallas_call(
        kernel,
        out_shape=jax.ShapeDtypeStruct((p, 2, w_pix, c_total2), jnp.float32),
        grid_spec=pltpu.PrefetchScalarGridSpec(
            num_scalar_prefetch=0,
            grid=(n_tiles,),
            in_specs=[
                pl.BlockSpec((rows_per_tile, w_pix, cin), lambda t: (t, 0, 0)),
                pl.BlockSpec((1, cin), lambda t: (0, 0)),
                pl.BlockSpec((1, cin), lambda t: (0, 0)),
                pl.BlockSpec(w_perm.shape, lambda t: (0, 0)),
                pl.BlockSpec(bias_perm.shape, lambda t: (0, 0)),
                pl.BlockSpec((rows_per_tile, 2, w_pix, 2 * cskip),
                             lambda t: (t, 0, 0, 0)),
            ],
            out_specs=pl.BlockSpec((rows_per_tile, 2, w_pix, c_total2),
                                   lambda t: (t, 0, 0, 0)),
        ),
        compiler_params=pltpu.CompilerParams(
            dimension_semantics=("parallel",),
            vmem_limit_bytes=vmem_limit),
    )(x3, scale, shift, w_perm, bias_perm, skip4)


# ----------------------------------------------------------------------------
# Tile pickers (perf review: 512-2048 pixel tiles, VMEM budget, >=2 grid steps
# so both v7x TensorCores get work).
# ----------------------------------------------------------------------------
def _pick_tile_rows(p, w_pix, cin, cout, cskip):
    target_pixels = 2048
    rows = max(1, target_pixels // max(1, w_pix))
    c_total2 = 2 * (cout + cskip)

    def tile_bytes(r):
        return (r * w_pix * cin * 2 + r * 4 * w_pix * cskip * 4
                + r * 2 * w_pix * c_total2 * 4)

    budget = 12 * 1024 * 1024  # per buffer; pipelining double-buffers this
    while rows > 1 and tile_bytes(rows) > budget:
        rows //= 2
    rows = min(rows, p)
    if p >= 2:
        rows = min(rows, _cdiv(p, 2))
    return max(1, rows)


def _pick_stats_tile(m):
    if m <= 16:
        return m  # block == full dim, always legal
    half = _cdiv(m, 2)
    return int(min(2048, max(8, (half // 8) * 8)))


# ----------------------------------------------------------------------------
# Full UpsampleLayer forward, channels-last.
# ----------------------------------------------------------------------------
def upsample_layer_forward_nhwc(x, skip, gamma, beta, w, bias,
                                *, tile_rows=None, stats_tile=None):
    """
    out = concat([ConvTranspose2d_{k2,s2}(relu(BatchNorm2d(x))), skip], channel)
    x:    (N, H, W, Cin)   NHWC        skip: (N, 2H, 2W, Cskip)  NHWC
    gamma, beta: (Cin,)                w: (Cin, Cout, 2, 2)  (PyTorch layout)
    bias: (Cout,)
    returns (N, 2H, 2W, Cout + Cskip) float32, NHWC.
    """
    n, h, w_pix, cin = x.shape
    cout = w.shape[1]
    cskip = skip.shape[3]
    p = n * h
    m = p * w_pix

    # x is stored bf16 (read twice: stats + deconv); all views below are free
    # row-major reshapes -- no transposes anywhere inside the layer.
    x_bf = x.astype(jnp.bfloat16)
    x2d = x_bf.reshape(m, cin)
    x3 = x_bf.reshape(p, w_pix, cin)
    skip4 = skip.astype(jnp.float32).reshape(p, 2, w_pix, 2 * cskip)

    # --- BatchNorm2d batch statistics (training-mode, biased variance) ------
    if stats_tile is None:
        stats_tile = _pick_stats_tile(m)
    s, sq = channel_stats(x2d, stats_tile)
    mean = s / m
    # TODO(synk): single-pass E[x^2]-E[x]^2; switch to a two-pass/Welford scheme
    # if cancellation ever matters for very large, far-from-zero activations.
    var = jnp.maximum(sq / m - mean * mean, 0.0)
    scale = (gamma.astype(jnp.float32) / jnp.sqrt(var + EPS)).reshape(1, cin)
    shift = (beta.astype(jnp.float32) - mean * scale[0]).reshape(1, cin)

    # --- fused BN + ReLU + ConvTranspose2d + NHWC scatter + concat(skip) ----
    # weight columns ordered (ki, kj, cout) so each row-tile lands contiguously
    # in the NHWC output view.
    w_perm = jnp.transpose(w, (0, 2, 3, 1)).reshape(cin, 4 * cout)
    w_perm = w_perm.astype(jnp.bfloat16)
    bias_perm = jnp.tile(bias.astype(jnp.float32), 4).reshape(1, 4 * cout)

    if tile_rows is None:
        tile_rows = _pick_tile_rows(p, w_pix, cin, cout, cskip)
    out = bn_relu_deconv_concat(x3, scale, shift, w_perm, bias_perm, skip4,
                                tile_rows)

    # (N*H, 2, W, 2*(Cout+Cskip)) is a row-major view of the NHWC output.
    return out.reshape(n, 2 * h, 2 * w_pix, cout + cskip)


# ----------------------------------------------------------------------------
# Pure-JAX reference mirroring the PyTorch UpsampleLayer.forward (training-mode
# BN, NCHW), with the same bf16 rounding of x / weights the kernels apply.
# ----------------------------------------------------------------------------
def _reference_nchw(x, skip, gamma, beta, w, bias):
    xb = x.astype(jnp.bfloat16).astype(jnp.float32)
    wb = w.astype(jnp.bfloat16)
    mean = jnp.mean(xb, axis=(0, 2, 3), keepdims=True)
    var = jnp.mean(xb * xb, axis=(0, 2, 3), keepdims=True) - mean * mean
    xn = (xb - mean) / jnp.sqrt(var + EPS) * gamma[None, :, None, None] \
         + beta[None, :, None, None]
    xr = jnp.maximum(xn, 0.0).astype(jnp.bfloat16)
    y = jnp.einsum("ncij,cokl->noikjl", xr, wb,
                   preferred_element_type=jnp.float32)
    n, cout, h, _, w_pix, _ = y.shape
    y = y.reshape(n, cout, 2 * h, 2 * w_pix) + bias[None, :, None, None]
    return jnp.concatenate([y, skip], axis=1)


if __name__ == "__main__":
    key = jax.random.PRNGKey(0)
    k1, k2, k3, k4, k5, k6 = jax.random.split(key, 6)

    N, Cin, H, W = 2, 4, 16, 16
    Cout, Cskip = 8, 8

    x_nchw = jax.random.normal(k1, (N, Cin, H, W), dtype=jnp.float32)
    skip_nchw = jax.random.normal(k2, (N, Cskip, 2 * H, 2 * W), dtype=jnp.float32)
    gamma = 1.0 + 0.1 * jax.random.normal(k3, (Cin,), dtype=jnp.float32)
    beta = 0.1 * jax.random.normal(k4, (Cin,), dtype=jnp.float32)
    w = 0.2 * jax.random.normal(k5, (Cin, Cout, 2, 2), dtype=jnp.float32)
    bias = 0.1 * jax.random.normal(k6, (Cout,), dtype=jnp.float32)

    # The layer is channels-last end-to-end; convert once at the boundary
    # (in a full NHWC UNet these transposes do not exist).
    x_nhwc = jnp.transpose(x_nchw, (0, 2, 3, 1))
    skip_nhwc = jnp.transpose(skip_nchw, (0, 2, 3, 1))

    fwd = jax.jit(upsample_layer_forward_nhwc,
                  static_argnames=("tile_rows", "stats_tile"))

    # Run 1: auto-picked large tiles.
    out1 = jax.block_until_ready(fwd(x_nhwc, skip_nhwc, gamma, beta, w, bias))
    # Run 2: small odd tiles -> exercises multi-step grids, the stats-chunk
    # clamping and the tail-row masking.
    out2 = jax.block_until_ready(
        fwd(x_nhwc, skip_nhwc, gamma, beta, w, bias,
            tile_rows=6, stats_tile=104))

    ref_nhwc = jnp.transpose(
        _reference_nchw(x_nchw, skip_nchw, gamma, beta, w, bias), (0, 2, 3, 1))

    assert out1.shape == (N, 2 * H, 2 * W, Cout + Cskip), out1.shape
    assert out2.shape == out1.shape, out2.shape
    assert bool(jnp.allclose(out1, ref_nhwc, atol=1e-2, rtol=1e-2)), \
        "mismatch vs reference (auto tiles)"
    assert bool(jnp.allclose(out2, ref_nhwc, atol=1e-2, rtol=1e-2)), \
        "mismatch vs reference (small tiles / tail path)"

    print("KERNEL_OK")
</pallas_src>

<mosaic_0001>
module attributes {stable_mosaic.version = 11 : i64} {
  func.func @_channel_stats_kernel(%arg0: i32, %arg1: i32, %arg2: memref<256x4xbf16, #tpu.memory_space<vmem>>, %arg3: memref<8x4xf32, #tpu.memory_space<vmem>>, %arg4: memref<8x4xf32, #tpu.memory_space<vmem>>) attributes {dimension_semantics = [#tpu.dimension_semantics<parallel>, #tpu.dimension_semantics<arbitrary>], iteration_bounds = array<i64: 2, 1>, scalar_prefetch = 0 : i64, scratch_operands = 0 : i64, tpu.core_type = #tpu.core_type<tc>, window_params = [{transform_indices = @transform_0, window_bounds = array<i64: 256, 4>}, {transform_indices = @transform_1, window_bounds = array<i64: 8, 4>}, {transform_indices = @transform_2, window_bounds = array<i64: 8, 4>}]} {
    %c0_i32 = arith.constant 0 : i32
    %0 = arith.cmpi eq, %arg1, %c0_i32 : i32
    %1 = arith.extui %0 : i1 to i32
    %c0_i32_0 = arith.constant 0 : i32
    %2 = arith.cmpi ne, %1, %c0_i32_0 : i32
    scf.if %2 {
      %cst_12 = arith.constant 0.000000e+00 : f32
      %27 = vector.broadcast %cst_12 : f32 to vector<8x4xf32>
      %c0_13 = arith.constant 0 : index
      %c0_14 = arith.constant 0 : index
      %28 = vector.load %arg3[%c0_13, %c0_14] : memref<8x4xf32, #tpu.memory_space<vmem>>, vector<8x4xf32>
      tpu.vector_store %arg3[%c0_13, %c0_14], %27 {strides = array<i32>} : memref<8x4xf32, #tpu.memory_space<vmem>>, vector<8x4xf32>,
      %cst_15 = arith.constant 0.000000e+00 : f32
      %29 = vector.broadcast %cst_15 : f32 to vector<8x4xf32>
      %c0_16 = arith.constant 0 : index
      %c0_17 = arith.constant 0 : index
      %30 = vector.load %arg4[%c0_16, %c0_17] : memref<8x4xf32, #tpu.memory_space<vmem>>, vector<8x4xf32>
      tpu.vector_store %arg4[%c0_16, %c0_17], %29 {strides = array<i32>} : memref<8x4xf32, #tpu.memory_space<vmem>>, vector<8x4xf32>,
    } else {
    }
    %c1_i32 = arith.constant 1 : i32
    %3 = arith.muli %arg0, %c1_i32 : i32
    %4 = arith.addi %3, %arg1 : i32
    %c256_i32 = arith.constant 256 : i32
    %5 = arith.muli %4, %c256_i32 : i32
    %6 = tpu.iota {dimensions = array<i32: 0>} : vector<256x1xi32>
    %7 = vector.broadcast %5 : i32 to vector<256x1xi32>
    %8 = arith.addi %7, %6 : vector<256x1xi32>
    %c512_i32 = arith.constant 512 : i32
    %9 = vector.broadcast %c512_i32 : i32 to vector<256x1xi32>
    %10 = arith.cmpi slt, %8, %9 : vector<256x1xi32>
    %c0 = arith.constant 0 : index
    %c0_1 = arith.constant 0 : index
    %11 = vector.load %arg2[%c0, %c0_1] : memref<256x4xbf16, #tpu.memory_space<vmem>>, vector<256x4xbf16>
    %12 = arith.extf %11 : vector<256x4xbf16> to vector<256x4xf32>
    %cst = arith.constant 0.000000e+00 : f32
    %13 = vector.shape_cast %10 : vector<256x1xi1> to vector<256x1xi1>
    %14 = vector.broadcast %13 : vector<256x1xi1> to vector<256x4xi1>
    %15 = vector.broadcast %cst : f32 to vector<256x4xf32>
    %16 = arith.select %14, %12, %15 : vector<256x4xi1>, vector<256x4xf32>
    %17 = vector.shape_cast %16 : vector<256x4xf32> to vector<32x8x4xf32>
    %c0_2 = arith.constant 0 : index
    %c0_3 = arith.constant 0 : index
    %18 = vector.load %arg3[%c0_2, %c0_3] : memref<8x4xf32, #tpu.memory_space<vmem>>, vector<8x4xf32>
    %cst_4 = arith.constant dense<0.000000e+00> : vector<8x4xf32>
    %19 = vector.multi_reduction <add>, %17, %cst_4 [0] : vector<32x8x4xf32> to vector<8x4xf32>
    %20 = arith.addf %18, %19 : vector<8x4xf32>
    %c0_5 = arith.constant 0 : index
    %c0_6 = arith.constant 0 : index
    %21 = vector.load %arg3[%c0_5, %c0_6] : memref<8x4xf32, #tpu.memory_space<vmem>>, vector<8x4xf32>
    tpu.vector_store %arg3[%c0_5, %c0_6], %20 {strides = array<i32>} : memref<8x4xf32, #tpu.memory_space<vmem>>, vector<8x4xf32>,
    %c0_7 = arith.constant 0 : index
    %c0_8 = arith.constant 0 : index
    %22 = vector.load %arg4[%c0_7, %c0_8] : memref<8x4xf32, #tpu.memory_space<vmem>>, vector<8x4xf32>
    %23 = arith.mulf %17, %17 : vector<32x8x4xf32>
    %cst_9 = arith.constant dense<0.000000e+00> : vector<8x4xf32>
    %24 = vector.multi_reduction <add>, %23, %cst_9 [0] : vector<32x8x4xf32> to vector<8x4xf32>
    %25 = arith.addf %22, %24 : vector<8x4xf32>
    %c0_10 = arith.constant 0 : index
    %c0_11 = arith.constant 0 : index
    %26 = vector.load %arg4[%c0_10, %c0_11] : memref<8x4xf32, #tpu.memory_space<vmem>>, vector<8x4xf32>
    tpu.vector_store %arg4[%c0_10, %c0_11], %25 {strides = array<i32>} : memref<8x4xf32, #tpu.memory_space<vmem>>, vector<8x4xf32>,
    return
  }
  func.func @transform_0(%arg0: i32, %arg1: i32) -> (i32, i32) {
    %c1_i32 = arith.constant 1 : i32
    %0 = arith.muli %arg0, %c1_i32 : i32
    %1 = arith.addi %0, %arg1 : i32
    %c1_i32_0 = arith.constant 1 : i32
    %2 = arith.minsi %1, %c1_i32_0 : i32
    %c0_i32 = arith.constant 0 : i32
    %c0_i32_1 = arith.constant 0 : i32
    return %2, %c0_i32 : i32, i32
  }
  func.func @transform_1(%arg0: i32, %arg1: i32) -> (i32, i32) {
    %c0_i32 = arith.constant 0 : i32
    %c0_i32_0 = arith.constant 0 : i32
    return %arg0, %c0_i32 : i32, i32
  }
  func.func @transform_2(%arg0: i32, %arg1: i32) -> (i32, i32) {
    %c0_i32 = arith.constant 0 : i32
    %c0_i32_0 = arith.constant 0 : i32
    return %arg0, %c0_i32 : i32, i32
  }
}

module attributes {stable_mosaic.version = 11 : i64} {
  func.func @_bn_relu_deconv_concat_kernel(%arg0: i32, %arg1: memref<16x16x4xbf16, #tpu.memory_space<vmem>>, %arg2: memref<1x4xf32, #tpu.memory_space<vmem>>, %arg3: memref<1x4xf32, #tpu.memory_space<vmem>>, %arg4: memref<4x32xbf16, #tpu.memory_space<vmem>>, %arg5: memref<1x32xf32, #tpu.memory_space<vmem>>, %arg6: memref<16x2x16x16xf32, #tpu.memory_space<vmem>>, %arg7: memref<16x2x16x32xf32, #tpu.memory_space<vmem>>) attributes {dimension_semantics = [#tpu.dimension_semantics<parallel>], iteration_bounds = array<i64: 2>, scalar_prefetch = 0 : i64, scratch_operands = 0 : i64, tpu.core_type = #tpu.core_type<tc>, window_params = [{transform_indices = @transform_0, window_bounds = array<i64: 16, 16, 4>}, {pipeline_mode = #tpu.pipeline_mode<synchronous>, transform_indices = @transform_1, window_bounds = array<i64: 1, 4>}, {pipeline_mode = #tpu.pipeline_mode<synchronous>, transform_indices = @transform_2, window_bounds = array<i64: 1, 4>}, {pipeline_mode = #tpu.pipeline_mode<synchronous>, transform_indices = @transform_3, window_bounds = array<i64: 4, 32>}, {pipeline_mode = #tpu.pipeline_mode<synchronous>, transform_indices = @transform_4, window_bounds = array<i64: 1, 32>}, {transform_indices = @transform_5, window_bounds = array<i64: 16, 2, 16, 16>}, {transform_indices = @transform_6, window_bounds = array<i64: 16, 2, 16, 32>}]} {
    %c16_i32 = arith.constant 16 : i32
    %0 = arith.muli %arg0, %c16_i32 : i32
    %1 = tpu.iota {dimensions = array<i32: 0>} : vector<16x1x1xi32>
    %2 = vector.broadcast %0 : i32 to vector<16x1x1xi32>
    %3 = arith.addi %2, %1 : vector<16x1x1xi32>
    %c32_i32 = arith.constant 32 : i32
    %4 = vector.broadcast %c32_i32 : i32 to vector<16x1x1xi32>
    %5 = arith.cmpi slt, %3, %4 : vector<16x1x1xi32>
    %c0 = arith.constant 0 : index
    %c0_0 = arith.constant 0 : index
    %c0_1 = arith.constant 0 : index
    %6 = vector.load %arg1[%c0, %c0_0, %c0_1] : memref<16x16x4xbf16, #tpu.memory_space<vmem>>, vector<16x16x4xbf16>
    %7 = arith.extf %6 : vector<16x16x4xbf16> to vector<16x16x4xf32>
    %cst = arith.constant 0.000000e+00 : f32
    %8 = vector.shape_cast %5 : vector<16x1x1xi1> to vector<16x1x1xi1>
    %9 = vector.broadcast %8 : vector<16x1x1xi1> to vector<16x16x4xi1>
    %10 = vector.broadcast %cst : f32 to vector<16x16x4xf32>
    %11 = arith.select %9, %7, %10 : vector<16x16x4xi1>, vector<16x16x4xf32>
    %c0_2 = arith.constant 0 : index
    %c0_3 = arith.constant 0 : index
    %12 = vector.load %arg2[%c0_2, %c0_3] : memref<1x4xf32, #tpu.memory_space<vmem>>, vector<1x4xf32>
    %13 = vector.shape_cast %12 : vector<1x4xf32> to vector<1x1x4xf32>
    %14 = vector.broadcast %13 : vector<1x1x4xf32> to vector<16x16x4xf32>
    %15 = arith.mulf %11, %14 : vector<16x16x4xf32>
    %c0_4 = arith.constant 0 : index
    %c0_5 = arith.constant 0 : index
    %16 = vector.load %arg3[%c0_4, %c0_5] : memref<1x4xf32, #tpu.memory_space<vmem>>, vector<1x4xf32>
    %17 = vector.shape_cast %16 : vector<1x4xf32> to vector<1x1x4xf32>
    %18 = vector.broadcast %17 : vector<1x1x4xf32> to vector<16x16x4xf32>
    %19 = arith.addf %15, %18 : vector<16x16x4xf32>
    %cst_6 = arith.constant 0.000000e+00 : f32
    %20 = vector.broadcast %cst_6 : f32 to vector<16x16x4xf32>
    %21 = arith.maximumf %19, %20 : vector<16x16x4xf32>
    %22 = arith.truncf %21 : vector<16x16x4xf32> to vector<16x16x4xbf16>
    %23 = vector.shape_cast %22 : vector<16x16x4xbf16> to vector<256x4xbf16>
    %c0_7 = arith.constant 0 : index
    %c0_8 = arith.constant 0 : index
    %24 = vector.load %arg4[%c0_7, %c0_8] : memref<4x32xbf16, #tpu.memory_space<vmem>>, vector<4x32xbf16>
    %cst_9 = arith.constant dense<0.000000e+00> : vector<256x32xf32>
    %25 = tpu.matmul %23, %24, %cst_9 {dimension_numbers = #tpu.dot_dimension_numbers<[1], [0], [0], [1], [0, 0, 1, 1], [], []>} : vector<256x4xbf16>, vector<4x32xbf16>, vector<256x32xf32> -> vector<256x32xf32>
    %c0_10 = arith.constant 0 : index
    %c0_11 = arith.constant 0 : index
    %26 = vector.load %arg5[%c0_10, %c0_11] : memref<1x32xf32, #tpu.memory_space<vmem>>, vector<1x32xf32>
    %27 = vector.broadcast %26 : vector<1x32xf32> to vector<256x32xf32>
    %28 = arith.addf %25, %27 : vector<256x32xf32>
    %29 = vector.shape_cast %28 : vector<256x32xf32> to vector<16x16x32xf32>
    %30 = vector.extract_strided_slice %29 {offsets = [0, 0, 0], sizes = [16, 16, 16], strides = [1, 1, 1]} : vector<16x16x32xf32> to vector<16x16x16xf32>
    %c0_12 = arith.constant 0 : index
    %c0_13 = arith.constant 0 : index
    %c0_14 = arith.constant 0 : index
    %c0_15 = arith.constant 0 : index
    %31 = vector.load %arg6[%c0_12, %c0_13, %c0_14, %c0_15] : memref<16x2x16x16xf32, #tpu.memory_space<vmem>>, vector<16x1x16x16xf32>
    %32 = vector.shape_cast %31 : vector<16x1x16x16xf32> to vector<16x16x16xf32>
    %33 = vector.extract_strided_slice %30 {offsets = [0, 0, 0], sizes = [16, 16, 8], strides = [1, 1, 1]} : vector<16x16x16xf32> to vector<16x16x8xf32>
    %34 = vector.extract_strided_slice %32 {offsets = [0, 0, 0], sizes = [16, 16, 8], strides = [1, 1, 1]} : vector<16x16x16xf32> to vector<16x16x8xf32>
    %35 = vector.extract_strided_slice %30 {offsets = [0, 0, 8], sizes = [16, 16, 8], strides = [1, 1, 1]} : vector<16x16x16xf32> to vector<16x16x8xf32>
    %36 = vector.extract_strided_slice %32 {offsets = [0, 0, 8], sizes = [16, 16, 8], strides = [1, 1, 1]} : vector<16x16x16xf32> to vector<16x16x8xf32>
    %37 = tpu.concatenate %33, %34, %35, %36 in 2 : vector<16x16x8xf32>, vector<16x16x8xf32>, vector<16x16x8xf32>, vector<16x16x8xf32> -> vector<16x16x32xf32>
    %c0_16 = arith.constant 0 : index
    %c0_17 = arith.constant 0 : index
    %c0_18 = arith.constant 0 : index
    %c0_19 = arith.constant 0 : index
    %38 = vector.load %arg7[%c0_16, %c0_17, %c0_18, %c0_19] : memref<16x2x16x32xf32, #tpu.memory_space<vmem>>, vector<16x1x16x32xf32>
    %39 = vector.shape_cast %38 : vector<16x1x16x32xf32> to vector<16x16x32xf32>
    %40 = vector.shape_cast %37 : vector<16x16x32xf32> to vector<16x1x16x32xf32>
    tpu.vector_store %arg7[%c0_16, %c0_17, %c0_18, %c0_19], %40 {strides = array<i32>} : memref<16x2x16x32xf32, #tpu.memory_space<vmem>>, vector<16x1x16x32xf32>,
    %41 = vector.extract_strided_slice %29 {offsets = [0, 0, 16], sizes = [16, 16, 16], strides = [1, 1, 1]} : vector<16x16x32xf32> to vector<16x16x16xf32>
    %c0_20 = arith.constant 0 : index
    %c1 = arith.constant 1 : index
    %c0_21 = arith.constant 0 : index
    %c0_22 = arith.constant 0 : index
    %42 = vector.load %arg6[%c0_20, %c1, %c0_21, %c0_22] : memref<16x2x16x16xf32, #tpu.memory_space<vmem>>, vector<16x1x16x16xf32>
    %43 = vector.shape_cast %42 : vector<16x1x16x16xf32> to vector<16x16x16xf32>
    %44 = vector.extract_strided_slice %41 {offsets = [0, 0, 0], sizes = [16, 16, 8], strides = [1, 1, 1]} : vector<16x16x16xf32> to vector<16x16x8xf32>
    %45 = vector.extract_strided_slice %43 {offsets = [0, 0, 0], sizes = [16, 16, 8], strides = [1, 1, 1]} : vector<16x16x16xf32> to vector<16x16x8xf32>
    %46 = vector.extract_strided_slice %41 {offsets = [0, 0, 8], sizes = [16, 16, 8], strides = [1, 1, 1]} : vector<16x16x16xf32> to vector<16x16x8xf32>
    %47 = vector.extract_strided_slice %43 {offsets = [0, 0, 8], sizes = [16, 16, 8], strides = [1, 1, 1]} : vector<16x16x16xf32> to vector<16x16x8xf32>
    %48 = tpu.concatenate %44, %45, %46, %47 in 2 : vector<16x16x8xf32>, vector<16x16x8xf32>, vector<16x16x8xf32>, vector<16x16x8xf32> -> vector<16x16x32xf32>
    %c0_23 = arith.constant 0 : index
    %c1_24 = arith.constant 1 : index
    %c0_25 = arith.constant 0 : index
    %c0_26 = arith.constant 0 : index
    %49 = vector.load %arg7[%c0_23, %c1_24, %c0_25, %c0_26] : memref<16x2x16x32xf32, #tpu.memory_space<vmem>>, vector<16x1x16x32xf32>
    %50 = vector.shape_cast %49 : vector<16x1x16x32xf32> to vector<16x16x32xf32>
    %51 = vector.shape_cast %48 : vector<16x16x32xf32> to vector<16x1x16x32xf32>
    tpu.vector_store %arg7[%c0_23, %c1_24, %c0_25, %c0_26], %51 {strides = array<i32>} : memref<16x2x16x32xf32, #tpu.memory_space<vmem>>, vector<16x1x16x32xf32>,
    return
  }
  func.func @transform_0(%arg0: i32) -> (i32, i32, i32) {
    %c0_i32 = arith.constant 0 : i32
    %c0_i32_0 = arith.constant 0 : i32
    %c0_i32_1 = arith.constant 0 : i32
    return %arg0, %c0_i32, %c0_i32_0 : i32, i32, i32
  }
  func.func @transform_1(%arg0: i32) -> (i32, i32) {
    %c0_i32 = arith.constant 0 : i32
    %c0_i32_0 = arith.constant 0 : i32
    %c0_i32_1 = arith.constant 0 : i32
    return %c0_i32, %c0_i32_0 : i32, i32
  }
  func.func @transform_2(%arg0: i32) -> (i32, i32) {
    %c0_i32 = arith.constant 0 : i32
    %c0_i32_0 = arith.constant 0 : i32
    %c0_i32_1 = arith.constant 0 : i32
    return %c0_i32, %c0_i32_0 : i32, i32
  }
  func.func @transform_3(%arg0: i32) -> (i32, i32) {
    %c0_i32 = arith.constant 0 : i32
    %c0_i32_0 = arith.constant 0 : i32
    %c0_i32_1 = arith.constant 0 : i32
    return %c0_i32, %c0_i32_0 : i32, i32
  }
  func.func @transform_4(%arg0: i32) -> (i32, i32) {
    %c0_i32 = arith.constant 0 : i32
    %c0_i32_0 = arith.constant 0 : i32
    %c0_i32_1 = arith.constant 0 : i32
    return %c0_i32, %c0_i32_0 : i32, i32
  }
  func.func @transform_5(%arg0: i32) -> (i32, i32, i32, i32) {
    %c0_i32 = arith.constant 0 : i32
    %c0_i32_0 = arith.constant 0 : i32
    %c0_i32_1 = arith.constant 0 : i32
    %c0_i32_2 = arith.constant 0 : i32
    return %arg0, %c0_i32, %c0_i32_0, %c0_i32_1 : i32, i32, i32, i32
  }
  func.func @transform_6(%arg0: i32) -> (i32, i32, i32, i32) {
    %c0_i32 = arith.constant 0 : i32
    %c0_i32_0 = arith.constant 0 : i32
    %c0_i32_1 = arith.constant 0 : i32
    %c0_i32_2 = arith.constant 0 : i32
    return %arg0, %c0_i32, %c0_i32_0, %c0_i32_1 : i32, i32, i32, i32
  }
}

</mosaic_0001>

<llo_original>
// kernel: tile.8
$region0: #{tile.8}
  #allocation0 [shape = 's32[1]{0}', space=sflag, size = 0x4, scoped, tag = 'scoped memory for tile.8']
  %s0 = inlined_call_operand.vmem [shape: f32[8], index: 0, kind: input, shape index: {}]
  %s1 = inlined_call_operand.vmem [shape: f32[4,8], index: 1, kind: output, shape index: {}]
  // Predicated region
  $region2: #{tile.8} parent=0 // pred_check
    _
  $region3: #{tile.8} parent=0 // pred_check_branch
    %3 = sbr.rel (0) target = $region5
  $region4: #{tile.8} parent=0 // pred_region
    _
  $region5: #{tile.8} parent=0 // pred_fallthru
    _
  %v4 = vld [vmem:[%s0] ss:$0 sm:$0xff]
  %5 = vst [vmem:[%s1] sm:$0xf] %v4

// kernel: tile.9
$region0: #{tile.9}
  %s0 = inlined_call_operand.vmem [shape: f32[4,8], index: 0, kind: input, shape index: {}]
  %s1 = inlined_call_operand.vmem [shape: f32[1,32], index: 1, kind: output, shape index: {}]
  $region1: #{tile.9} parent=0
    #allocation0 [shape = 'u8[4096]{0}', space=vmem, size = 0x1000, scoped, tag = 'scoped mem for output reshape']
    #allocation1 [shape = 'u8[4096]{0}', space=vmem, size = 0x1000, scoped, tag = 'scoped mem for input reshape']
    %s3 = sshllo.u32 0, 4
    %v4 = vld [vmem:[%s0] sm:%s3]
    %5 = vst [vmem:[#allocation1] sm:%s3] %v4
    %v6 = vld [vmem:[#allocation1] sm:$0x1]
    %vm7 = vcmask 64512
    %8 = vst.msk [vmem:[#allocation0] sm:$0x1] %vm7, %v6
    %s9 = scalar_lea.vmem [#allocation1], 3
    %v10 = vld [vmem:[%s9] sm:$0x1]
    %11 = vrot.lane.b32.xlu0 %v10, 24
    %v12 = vpop.permute.xlu0 %11
    %vm13 = vcmask 261312
    %14 = vst.msk [vmem:[#allocation0] sm:$0x1] %vm13, %v12
    %s15 = scalar_lea.vmem [#allocation1], 2
    %v16 = vld [vmem:[%s15] sm:$0x1]
    %17 = vrot.lane.b32.xlu0 %v16, 16
    %v18 = vpop.permute.xlu0 %17
    %vm19 = vcmask 195712
    %20 = vst.msk [vmem:[#allocation0] sm:$0x1] %vm19, %v18
    %s21 = scalar_lea.vmem [#allocation1], 1
    %v22 = vld [vmem:[%s21] sm:$0x1]
    %23 = vrot.lane.b32.xlu0 %v22, 8
    %v24 = vpop.permute.xlu0 %23
    %vm25 = vcmask 130112
    %26 = vst.msk [vmem:[#allocation0] sm:$0x1] %vm25, %v24
    %s28 = sshllo.u32 0, 1
    %v30 = vld [vmem:[#allocation0] sm:%s28]
    %s31 = sshllo.u32 0, 1
    %32 = vst [vmem:[%s1] sm:%s31] %v30

// kernel: upsample_layer_forward_nhwc.2
$region0: #{upsample_layer_forward_nhwc.2}
  #allocation0 [shape = 'u32[]', space=smem, size = 0x4, offset = 0x4, fixed_abs, tag = 'smem constant byte address 0x4 - core index']
  #allocation1 [shape = 'u32[144,128]{1,0:T(1,128)}', space=vmem, size = 0x12000, scoped, tag = 'internal scratch']
  %s0 = inlined_call_operand.vmem [shape: bf16[512,4], index: 0, kind: input, shape index: {}]
  %s1 = inlined_call_operand.vmem [shape: f32[16,4], index: 1, kind: output, shape index: {0}]
  %s2 = inlined_call_operand.vmem [shape: f32[16,4], index: 2, kind: output, shape index: {1}]
  %3 = xla_tuple %s1, %s2
  %s4 = sld [smem:[#allocation0]]
  $region49: #{upsample_layer_forward_nhwc.2} parent=0
    _
  %s6 = ssub.s32 1, %s4
  %s7 = scalar_select 0, %s6, %s4
  loop: start=0, step=1, limit=4
  $region2: #{upsample_layer_forward_nhwc.2} parent=0 // loop_pre_header
    _
  $region3: #{upsample_layer_forward_nhwc.2} parent=0 // loop_header
    %s9 = sphi 0, %s13
    %p10 = scmp.ge.s32.totalorder %s9, 4
    %s16 = sphi 0, %s28
    %s17 = sphi 0, %s24
    %s18 = sphi 0, %s16
    %s19 = sphi 0, %s17
    %s20 = sphi 0, %s18
    %s21 = sphi 0, %s19
    %s37 = sphi 0, %s39
    %s40 = sphi 0, %s37
    %s41 = sphi 0, %s40
    %s57 = sphi 0, %s41
    %s63 = sphi 0, %s65
    %s66 = sphi 0, %s63
    %s67 = sphi 0, %s66
    %s83 = sphi 0, %s67
    %s89 = sphi 0, %s91
    %s92 = sphi 0, %s89
    %s93 = sphi 0, %s92
    %s109 = sphi 0, %s93
  $region4: #{upsample_layer_forward_nhwc.2} parent=0 // loop_header_branch
    %12 = sbr.rel (%p10) target = $region8
  $region5: #{upsample_layer_forward_nhwc.2} parent=0 // loop_body
    %s14 = ssub.s32 %s9, 1
    %s15 = ssub.s32 %s9, 2
    %s22 = sadd.s32 1, %s17
    %p23 = scmp.ge.s32.totalorder %s22, 1
    %s24 = scalar_select %p23, 0, %s22
    %s25 = sadd.s32 1, %s16
    %s26 = scalar_select %p23, %s25, %s16
    %p27 = scmp.ge.s32.totalorder %s26, 2
    %s28 = scalar_select %p27, 0, %s26
    %s29 = sadd.s32 %s16, %s17
    %p30 = scmp.lt.s32.totalorder %s29, 1
    %s31 = scalar_select %p30, %s29, 1
    %s32 = sadd.s32 %s28, %s24
    %p33 = scmp.lt.s32.totalorder %s32, 1
    %s34 = scalar_select %p33, %s32, 1
    %s35 = ssub.s32 %s31, %s34
    %p36 = scmp.eq.s32.totalorder %s35, 0
    %s38 = sadd.s32 %s37, 1
    %s39 = scalar_select %p36, %s37, %s38
    %p42 = pneg %p36
    %p43 = scmp.eq.s32.totalorder %s9, 1
    %p44 = por %p42, %p43
    %p45 = scmp.ne.s32.totalorder %s37, %s40
    %p46 = scmp.eq.s32.totalorder %s9, 0
    %p47 = por %p45, %p46
    %p48 = scmp.ne.s32.totalorder %s37, %s40
    %p49 = scmp.eq.s32.totalorder %s14, 1
    %p50 = por %p48, %p49
    %p51 = scmp.ne.s32.totalorder %s40, %s41
    %p52 = scmp.eq.s32.totalorder %s14, 0
    %p53 = por %p51, %p52
    %p54 = scmp.ne.s32.totalorder %s40, %s41
    %p55 = scmp.eq.s32.totalorder %s15, 1
    %p56 = por %p54, %p55
    %p58 = scmp.ne.s32.totalorder %s41, %s57
    %p59 = scmp.eq.s32.totalorder %s15, 0
    %p60 = por %p58, %p59
    %s61 = ssub.s32 %s16, %s28
    %p62 = scmp.eq.s32.totalorder %s61, 0
    %s64 = sadd.s32 %s63, 1
    %s65 = scalar_select %p62, %s63, %s64
    %p68 = pneg %p62
    %p69 = scmp.eq.s32.totalorder %s9, 1
    %p70 = por %p68, %p69
    %p71 = scmp.ne.s32.totalorder %s63, %s66
    %p72 = scmp.eq.s32.totalorder %s9, 0
    %p73 = por %p71, %p72
    %p74 = scmp.ne.s32.totalorder %s63, %s66
    %p75 = scmp.eq.s32.totalorder %s14, 1
    %p76 = por %p74, %p75
    %p77 = scmp.ne.s32.totalorder %s66, %s67
    %p78 = scmp.eq.s32.totalorder %s14, 0
    %p79 = por %p77, %p78
    %p80 = scmp.ne.s32.totalorder %s66, %s67
    %p81 = scmp.eq.s32.totalorder %s15, 1
    %p82 = por %p80, %p81
    %p84 = scmp.ne.s32.totalorder %s67, %s83
    %p85 = scmp.eq.s32.totalorder %s15, 0
    %p86 = por %p84, %p85
    %s87 = ssub.s32 %s16, %s28
    %p88 = scmp.eq.s32.totalorder %s87, 0
    %s90 = sadd.s32 %s89, 1
    %s91 = scalar_select %p88, %s89, %s90
    %p94 = pneg %p88
    %p95 = scmp.eq.s32.totalorder %s9, 1
    %p96 = por %p94, %p95
    %p97 = scmp.ne.s32.totalorder %s89, %s92
    %p98 = scmp.eq.s32.totalorder %s9, 0
    %p99 = por %p97, %p98
    %p100 = scmp.ne.s32.totalorder %s89, %s92
    %p101 = scmp.eq.s32.totalorder %s14, 1
    %p102 = por %p100, %p101
    %p103 = scmp.ne.s32.totalorder %s92, %s93
    %p104 = scmp.eq.s32.totalorder %s14, 0
    %p105 = por %p103, %p104
    %p106 = scmp.ne.s32.totalorder %s92, %s93
    %p107 = scmp.eq.s32.totalorder %s15, 1
    %p108 = por %p106, %p107
    %p110 = scmp.ne.s32.totalorder %s93, %s109
    %p111 = scmp.eq.s32.totalorder %s15, 0
    %p112 = por %p110, %p111
    %p113 = scmp.le.s32.totalorder 1, %s9
    %p114 = scmp.lt.s32.totalorder %s9, 3
    %p115 = pnand %p113, %p114
    %p116 = pneg %p115
    // Predicated region
    $region9: #{upsample_layer_forward_nhwc.2} parent=5 // pred_check
      _
    $region10: #{upsample_layer_forward_nhwc.2} parent=5 // pred_check_branch
      %118 = sbr.rel (%p115) target = $region12
    $region11: #{upsample_layer_forward_nhwc.2} parent=5 // pred_region
      %s119 = ssub.s32 %s9, 1
    $region12: #{upsample_layer_forward_nhwc.2} parent=5 // pred_fallthru
      _
    %p120 = scmp.lt.s32.totalorder %s9, 2
    // Predicated region
    $region13: #{upsample_layer_forward_nhwc.2} parent=5 // pred_check
      %p121 = pneg %p120
    $region14: #{upsample_layer_forward_nhwc.2} parent=5 // pred_check_branch
      %123 = sbr.rel (%p121) target = $region16
    $region15: #{upsample_layer_forward_nhwc.2} parent=5 // pred_region
      // Predicated region
      $region17: #{upsample_layer_forward_nhwc.2} parent=15 // pred_check
        %p124 = pneg %p47
      $region18: #{upsample_layer_forward_nhwc.2} parent=15 // pred_check_branch
        %126 = sbr.rel (%p124) target = $region20
      $region19: #{upsample_layer_forward_nhwc.2} parent=15 // pred_region
        %s127 = sadd.s32 %s16, %s17
        %p128 = scmp.lt.s32.totalorder %s127, 1
        %s129 = scalar_select %p128, %s127, 1
        %s130 = smul.u32 32, %s129
        %p131 = scmp.lt.s32.totalorder %s130, 63
        %s132 = scalar_select %p131, %s130, 63
        %s133 = smul.addr %s132, 4
        %s134 = scalar_lea.vmem %s0, %s133
        %s135 = sadd.s32 %s16, %s17
        %p136 = scmp.lt.s32.totalorder %s135, 1
        %s137 = scalar_select %p136, %s135, 1
        %s138 = smul.u32 32, %s137
      $region20: #{upsample_layer_forward_nhwc.2} parent=15 // pred_fallthru
        _
    $region16: #{upsample_layer_forward_nhwc.2} parent=5 // pred_fallthru
      _
    %p139 = scmp.le.s32.totalorder 1, %s9
    %p140 = scmp.lt.s32.totalorder %s9, 3
    %p141 = pnand %p139, %p140
    %p142 = pneg %p141
    // Predicated region
    $region21: #{upsample_layer_forward_nhwc.2} parent=5 // pred_check
      _
    $region22: #{upsample_layer_forward_nhwc.2} parent=5 // pred_check_branch
      %144 = sbr.rel (%p141) target = $region24
    $region23: #{upsample_layer_forward_nhwc.2} parent=5 // pred_region
      %s145 = ssub.s32 %s9, 1
      %s146 = sadd.s32 %s18, %s19
      %p147 = scmp.lt.s32.totalorder %s146, 1
      %s148 = scalar_select %p147, %s146, 1
      %s149 = smul.u32 32, %s148
      %p150 = scmp.lt.s32.totalorder %s149, 63
      %s151 = scalar_select %p150, %s149, 63
      %s152 = smul.addr %s151, 4
      %s153 = scalar_lea.vmem %s0, %s152
      %p154 = pneg %p53
      %p155 = pneg %p50
      %p156 = pneg %p79
      %p157 = pneg %p76
      %p158 = scmp.lt.s32.totalorder %s18, 1
      %s159 = scalar_select %p158, %s18, 1
      %s160 = smul.addr %s159, 8
      %s161 = scalar_lea.vmem %s1, %s160
      %p162 = pneg %p105
      %p163 = pneg %p102
      %p164 = scmp.lt.s32.totalorder %s18, 1
      %s165 = scalar_select %p164, %s18, 1
      %s166 = smul.addr %s165, 8
      %s167 = scalar_lea.vmem %s2, %s166
      %s168 = sadd.s32 %s18, %s19
      %p169 = scmp.lt.s32.totalorder %s168, 1
      %s170 = scalar_select %p169, %s168, 1
      %s171 = smul.u32 32, %s170
      %p172 = scmp.lt.s32.totalorder %s171, 63
      %s173 = scalar_select %p172, %s171, 63
      %s174 = smul.addr %s173, 4
      %s175 = scalar_lea.vmem %s0, %s174
      %s176 = sadd.s32 %s18, %s19
      %p177 = scmp.lt.s32.totalorder %s176, 1
      %s178 = scalar_select %p177, %s176, 1
      %s179 = smul.u32 32, %s178
      %p180 = scmp.lt.s32.totalorder %s18, 1
      %s181 = scalar_select %p180, %s18, 1
      %s182 = smul.addr %s181, 8
      %s183 = scalar_lea.vmem %s1, %s182
      %p184 = scmp.lt.s32.totalorder %s18, 1
      %s185 = scalar_select %p184, %s18, 1
      %s186 = smul.addr %s185, 8
      %s187 = scalar_lea.vmem %s2, %s186
      %p188 = scmp.eq.s32.totalorder %s19, 0
      // Predicated region
      $region25: #{upsample_layer_forward_nhwc.2} parent=23 // pred_check
        %p189 = pneg %p188
      $region26: #{upsample_layer_forward_nhwc.2} parent=23 // pred_check_branch
        %191 = sbr.rel (%p189) target = $region28
      $region27: #{upsample_layer_forward_nhwc.2} parent=23 // pred_region
        %vm192 = vcmask 31744
        %193 = vst.msk [vmem:[%s183] sm:$0xff] %vm192, 0.0
        %194 = vst.msk [vmem:[%s187] sm:$0xff] %vm192, 0.0
      $region28: #{upsample_layer_forward_nhwc.2} parent=23 // pred_fallthru
        _
      %s195 = sadd.s32 %s18, %s19
      %s196 = smul.u32 %s195, 256
      %v197 = vlaneseq
      %v198 = vshrl.u32 %v197, 7
      %v199 = vadd.s32 %v198, 8
      %v200 = vadd.s32 %v198, 16
      %v201 = vadd.s32 %v198, 24
      %v202 = vadd.s32 %v198, 32
      %v203 = vadd.s32 %v198, 40
      %v204 = vadd.s32 %v198, 48
      %v205 = vadd.s32 %v198, 56
      %v206 = vadd.s32 %v198, 64
      %v207 = vadd.s32 %v198, 72
      %v208 = vadd.s32 %v198, 80
      %v209 = vadd.s32 %v198, 88
      %v210 = vadd.s32 %v198, 96
      %v211 = vadd.s32 %v198, 104
      %v212 = vadd.s32 %v198, 112
      %v213 = vadd.s32 %v198, 120
      %v214 = vadd.s32 %v198, 128
      %v215 = vadd.s32 %v198, 136
      %v216 = vadd.s32 %v198, 144
      %v217 = vadd.s32 %v198, 152
      %v218 = vadd.s32 %v198, 160
      %v219 = vadd.s32 %v198, 168
      %v220 = vadd.s32 %v198, 176
      %v221 = vadd.s32 %v198, 184
      %v222 = vadd.s32 %v198, 192
      %v223 = vadd.s32 %v198, 200
      %v224 = vadd.s32 %v198, 208
      %v225 = vadd.s32 %v198, 216
      %v226 = vadd.s32 %v198, 224
      %v227 = vadd.s32 %v198, 232
      %v228 = vadd.s32 %v198, 240
      %v229 = vadd.s32 %v198, 248
      %v230 = vstv %s196
      %v231 = vadd.s32 %v230, %v198
      %v232 = vadd.s32 %v230, %v199
      %v233 = vadd.s32 %v230, %v200
      %v234 = vadd.s32 %v230, %v201
      %v235 = vadd.s32 %v230, %v202
      %v236 = vadd.s32 %v230, %v203
      %v237 = vadd.s32 %v230, %v204
      %v238 = vadd.s32 %v230, %v205
      %v239 = vadd.s32 %v230, %v206
      %v240 = vadd.s32 %v230, %v207
      %v241 = vadd.s32 %v230, %v208
      %v242 = vadd.s32 %v230, %v209
      %v243 = vadd.s32 %v230, %v210
      %v244 = vadd.s32 %v230, %v211
      %v245 = vadd.s32 %v230, %v212
      %v246 = vadd.s32 %v230, %v213
      %v247 = vadd.s32 %v230, %v214
      %v248 = vadd.s32 %v230, %v215
      %v249 = vadd.s32 %v230, %v216
      %v250 = vadd.s32 %v230, %v217
      %v251 = vadd.s32 %v230, %v218
      %v252 = vadd.s32 %v230, %v219
      %v253 = vadd.s32 %v230, %v220
      %v254 = vadd.s32 %v230, %v221
      %v255 = vadd.s32 %v230, %v222
      %v256 = vadd.s32 %v230, %v223
      %v257 = vadd.s32 %v230, %v224
      %v258 = vadd.s32 %v230, %v225
      %v259 = vadd.s32 %v230, %v226
      %v260 = vadd.s32 %v230, %v227
      %v261 = vadd.s32 %v230, %v228
      %v262 = vadd.s32 %v230, %v229
      %vm263 = vcmp.lt.s32.totalorder %v231, 512
      %vm264 = vcmp.lt.s32.totalorder %v232, 512
      %vm265 = vcmp.lt.s32.totalorder %v233, 512
      %vm266 = vcmp.lt.s32.totalorder %v234, 512
      %vm267 = vcmp.lt.s32.totalorder %v235, 512
      %vm268 = vcmp.lt.s32.totalorder %v236, 512
      %vm269 = vcmp.lt.s32.totalorder %v237, 512
      %vm270 = vcmp.lt.s32.totalorder %v238, 512
      %vm271 = vcmp.lt.s32.totalorder %v239, 512
      %vm272 = vcmp.lt.s32.totalorder %v240, 512
      %vm273 = vcmp.lt.s32.totalorder %v241, 512
      %vm274 = vcmp.lt.s32.totalorder %v242, 512
      %vm275 = vcmp.lt.s32.totalorder %v243, 512
      %vm276 = vcmp.lt.s32.totalorder %v244, 512
      %vm277 = vcmp.lt.s32.totalorder %v245, 512
      %vm278 = vcmp.lt.s32.totalorder %v246, 512
      %vm279 = vcmp.lt.s32.totalorder %v247, 512
      %vm280 = vcmp.lt.s32.totalorder %v248, 512
      %vm281 = vcmp.lt.s32.totalorder %v249, 512
      %vm282 = vcmp.lt.s32.totalorder %v250, 512
      %vm283 = vcmp.lt.s32.totalorder %v251, 512
      %vm284 = vcmp.lt.s32.totalorder %v252, 512
      %vm285 = vcmp.lt.s32.totalorder %v253, 512
      %vm286 = vcmp.lt.s32.totalorder %v254, 512
      %vm287 = vcmp.lt.s32.totalorder %v255, 512
      %vm288 = vcmp.lt.s32.totalorder %v256, 512
      %vm289 = vcmp.lt.s32.totalorder %v257, 512
      %vm290 = vcmp.lt.s32.totalorder %v258, 512
      %vm291 = vcmp.lt.s32.totalorder %v259, 512
      %vm292 = vcmp.lt.s32.totalorder %v260, 512
      %vm293 = vcmp.lt.s32.totalorder %v261, 512
      %vm294 = vcmp.lt.s32.totalorder %v262, 512
      %v295 = vld [vmem:[%s175] sm:$0xf]
      %v296 = vld [vmem:[%s175 + $0x4] sm:$0xf]
      %v297 = vld [vmem:[%s175 + $0x8] sm:$0xf]
      %v298 = vld [vmem:[%s175 + $0xc] sm:$0xf]
      %v299 = vld [vmem:[%s175 + $0x10] sm:$0xf]
      %v300 = vld [vmem:[%s175 + $0x14] sm:$0xf]
      %v301 = vld [vmem:[%s175 + $0x18] sm:$0xf]
      %v302 = vld [vmem:[%s175 + $0x1c] sm:$0xf]
      %v303 = vld [vmem:[%s175 + $0x20] sm:$0xf]
      %v304 = vld [vmem:[%s175 + $0x24] sm:$0xf]
      %v305 = vld [vmem:[%s175 + $0x28] sm:$0xf]
      %v306 = vld [vmem:[%s175 + $0x2c] sm:$0xf]
      %v307 = vld [vmem:[%s175 + $0x30] sm:$0xf]
      %v308 = vld [vmem:[%s175 + $0x34] sm:$0xf]
      %v309 = vld [vmem:[%s175 + $0x38] sm:$0xf]
      %v310 = vld [vmem:[%s175 + $0x3c] sm:$0xf]
      %v311 = vld [vmem:[%s175 + $0x40] sm:$0xf]
      %v312 = vld [vmem:[%s175 + $0x44] sm:$0xf]
      %v313 = vld [vmem:[%s175 + $0x48] sm:$0xf]
      %v314 = vld [vmem:[%s175 + $0x4c] sm:$0xf]
      %v315 = vld [vmem:[%s175 + $0x50] sm:$0xf]
      %v316 = vld [vmem:[%s175 + $0x54] sm:$0xf]
      %v317 = vld [vmem:[%s175 + $0x58] sm:$0xf]
      %v318 = vld [vmem:[%s175 + $0x5c] sm:$0xf]
      %v319 = vld [vmem:[%s175 + $0x60] sm:$0xf]
      %v320 = vld [vmem:[%s175 + $0x64] sm:$0xf]
      %v321 = vld [vmem:[%s175 + $0x68] sm:$0xf]
      %v322 = vld [vmem:[%s175 + $0x6c] sm:$0xf]
      %v323 = vld [vmem:[%s175 + $0x70] sm:$0xf]
      %v324 = vld [vmem:[%s175 + $0x74] sm:$0xf]
      %v325 = vld [vmem:[%s175 + $0x78] sm:$0xf]
      %v326 = vld [vmem:[%s175 + $0x7c] sm:$0xf]
      %v327 = vunpack.c.l.bf16 %v295
      %v328 = vunpack.c.l.bf16 %v296
      %v329 = vunpack.c.l.bf16 %v297
      %v330 = vunpack.c.l.bf16 %v298
      %v331 = vunpack.c.l.bf16 %v299
      %v332 = vunpack.c.l.bf16 %v300
      %v333 = vunpack.c.l.bf16 %v301
      %v334 = vunpack.c.l.bf16 %v302
      %v335 = vunpack.c.l.bf16 %v303
      %v336 = vunpack.c.l.bf16 %v304
      %v337 = vunpack.c.l.bf16 %v305
      %v338 = vunpack.c.l.bf16 %v306
      %v339 = vunpack.c.l.bf16 %v307
      %v340 = vunpack.c.l.bf16 %v308
      %v341 = vunpack.c.l.bf16 %v309
      %v342 = vunpack.c.l.bf16 %v310
      %v343 = vunpack.c.l.bf16 %v311
      %v344 = vunpack.c.l.bf16 %v312
      %v345 = vunpack.c.l.bf16 %v313
      %v346 = vunpack.c.l.bf16 %v314
      %v347 = vunpack.c.l.bf16 %v315
      %v348 = vunpack.c.l.bf16 %v316
      %v349 = vunpack.c.l.bf16 %v317
      %v350 = vunpack.c.l.bf16 %v318
      %v351 = vunpack.c.l.bf16 %v319
      %v352 = vunpack.c.l.bf16 %v320
      %v353 = vunpack.c.l.bf16 %v321
      %v354 = vunpack.c.l.bf16 %v322
      %v355 = vunpack.c.l.bf16 %v323
      %v356 = vunpack.c.l.bf16 %v324
      %v357 = vunpack.c.l.bf16 %v325
      %v358 = vunpack.c.l.bf16 %v326
      %v359 = vsel %vm263, 1, 0
      %v360 = vsel %vm264, 1, 0
      %v361 = vsel %vm265, 1, 0
      %v362 = vsel %vm266, 1, 0
      %v363 = vsel %vm267, 1, 0
      %v364 = vsel %vm268, 1, 0
      %v365 = vsel %vm269, 1, 0
      %v366 = vsel %vm270, 1, 0
      %v367 = vsel %vm271, 1, 0
      %v368 = vsel %vm272, 1, 0
      %v369 = vsel %vm273, 1, 0
      %v370 = vsel %vm274, 1, 0
      %v371 = vsel %vm275, 1, 0
      %v372 = vsel %vm276, 1, 0
      %v373 = vsel %vm277, 1, 0
      %v374 = vsel %vm278, 1, 0
      %v375 = vsel %vm279, 1, 0
      %v376 = vsel %vm280, 1, 0
      %v377 = vsel %vm281, 1, 0
      %v378 = vsel %vm282, 1, 0
      %v379 = vsel %vm283, 1, 0
      %v380 = vsel %vm284, 1, 0
      %v381 = vsel %vm285, 1, 0
      %v382 = vsel %vm286, 1, 0
      %v383 = vsel %vm287, 1, 0
      %v384 = vsel %vm288, 1, 0
      %v385 = vsel %vm289, 1, 0
      %v386 = vsel %vm290, 1, 0
      %v387 = vsel %vm291, 1, 0
      %v388 = vsel %vm292, 1, 0
      %v389 = vsel %vm293, 1, 0
      %v390 = vsel %vm294, 1, 0
      %vm391 = vcmp.eq.s32.totalorder %v359, 1
      %vm392 = vcmp.eq.s32.totalorder %v360, 1
      %vm393 = vcmp.eq.s32.totalorder %v361, 1
      %vm394 = vcmp.eq.s32.totalorder %v362, 1
      %vm395 = vcmp.eq.s32.totalorder %v363, 1
      %vm396 = vcmp.eq.s32.totalorder %v364, 1
      %vm397 = vcmp.eq.s32.totalorder %v365, 1
      %vm398 = vcmp.eq.s32.totalorder %v366, 1
      %vm399 = vcmp.eq.s32.totalorder %v367, 1
      %vm400 = vcmp.eq.s32.totalorder %v368, 1
      %vm401 = vcmp.eq.s32.totalorder %v369, 1
      %vm402 = vcmp.eq.s32.totalorder %v370, 1
      %vm403 = vcmp.eq.s32.totalorder %v371, 1
      %vm404 = vcmp.eq.s32.totalorder %v372, 1
      %vm405 = vcmp.eq.s32.totalorder %v373, 1
      %vm406 = vcmp.eq.s32.totalorder %v374, 1
      %vm407 = vcmp.eq.s32.totalorder %v375, 1
      %vm408 = vcmp.eq.s32.totalorder %v376, 1
      %vm409 = vcmp.eq.s32.totalorder %v377, 1
      %vm410 = vcmp.eq.s32.totalorder %v378, 1
      %vm411 = vcmp.eq.s32.totalorder %v379, 1
      %vm412 = vcmp.eq.s32.totalorder %v380, 1
      %vm413 = vcmp.eq.s32.totalorder %v381, 1
      %vm414 = vcmp.eq.s32.totalorder %v382, 1
      %vm415 = vcmp.eq.s32.totalorder %v383, 1
      %vm416 = vcmp.eq.s32.totalorder %v384, 1
      %vm417 = vcmp.eq.s32.totalorder %v385, 1
      %vm418 = vcmp.eq.s32.totalorder %v386, 1
      %vm419 = vcmp.eq.s32.totalorder %v387, 1
      %vm420 = vcmp.eq.s32.totalorder %v388, 1
      %vm421 = vcmp.eq.s32.totalorder %v389, 1
      %vm422 = vcmp.eq.s32.totalorder %v390, 1
      %v423 = vsel %vm391, %v327, 0.0
      %v424 = vsel %vm392, %v328, 0.0
      %v425 = vsel %vm393, %v329, 0.0
      %v426 = vsel %vm394, %v330, 0.0
      %v427 = vsel %vm395, %v331, 0.0
      %v428 = vsel %vm396, %v332, 0.0
      %v429 = vsel %vm397, %v333, 0.0
      %v430 = vsel %vm398, %v334, 0.0
      %v431 = vsel %vm399, %v335, 0.0
      %v432 = vsel %vm400, %v336, 0.0
      %v433 = vsel %vm401, %v337, 0.0
      %v434 = vsel %vm402, %v338, 0.0
      %v435 = vsel %vm403, %v339, 0.0
      %v436 = vsel %vm404, %v340, 0.0
      %v437 = vsel %vm405, %v341, 0.0
      %v438 = vsel %vm406, %v342, 0.0
      %v439 = vsel %vm407, %v343, 0.0
      %v440 = vsel %vm408, %v344, 0.0
      %v441 = vsel %vm409, %v345, 0.0
      %v442 = vsel %vm410, %v346, 0.0
      %v443 = vsel %vm411, %v347, 0.0
      %v444 = vsel %vm412, %v348, 0.0
      %v445 = vsel %vm413, %v349, 0.0
      %v446 = vsel %vm414, %v350, 0.0
      %v447 = vsel %vm415, %v351, 0.0
      %v448 = vsel %vm416, %v352, 0.0
      %v449 = vsel %vm417, %v353, 0.0
      %v450 = vsel %vm418, %v354, 0.0
      %v451 = vsel %vm419, %v355, 0.0
      %v452 = vsel %vm420, %v356, 0.0
      %v453 = vsel %vm421, %v357, 0.0
      %v454 = vsel %vm422, %v358, 0.0
      %v455 = vld [vmem:[%s183] sm:$0xff]
      %vm456 = vcmask 31744
      %v457 = vsel %vm456, %v423, 0.0
      %v458 = vsel %vm456, %v424, 0.0
      %v459 = vadd.f32 %v457, %v458
      %v460 = vsel %vm456, %v425, 0.0
      %v461 = vadd.f32 %v459, %v460
      %v462 = vsel %vm456, %v426, 0.0
      %v463 = vadd.f32 %v461, %v462
      %v464 = vsel %vm456, %v427, 0.0
      %v465 = vadd.f32 %v463, %v464
      %v466 = vsel %vm456, %v428, 0.0
      %v467 = vadd.f32 %v465, %v466
      %v468 = vsel %vm456, %v429, 0.0
      %v469 = vadd.f32 %v467, %v468
      %v470 = vsel %vm456, %v430, 0.0
      %v471 = vadd.f32 %v469, %v470
      %v472 = vsel %vm456, %v431, 0.0
      %v473 = vadd.f32 %v471, %v472
      %v474 = vsel %vm456, %v432, 0.0
      %v475 = vadd.f32 %v473, %v474
      %v476 = vsel %vm456, %v433, 0.0
      %v477 = vadd.f32 %v475, %v476
      %v478 = vsel %vm456, %v434, 0.0
      %v479 = vadd.f32 %v477, %v478
      %v480 = vsel %vm456, %v435, 0.0
      %v481 = vadd.f32 %v479, %v480
      %v482 = vsel %vm456, %v436, 0.0
      %v483 = vadd.f32 %v481, %v482
      %v484 = vsel %vm456, %v437, 0.0
      %v485 = vadd.f32 %v483, %v484
      %v486 = vsel %vm456, %v438, 0.0
      %v487 = vadd.f32 %v485, %v486
      %v488 = vsel %vm456, %v439, 0.0
      %v489 = vadd.f32 %v487, %v488
      %v490 = vsel %vm456, %v440, 0.0
      %v491 = vadd.f32 %v489, %v490
      %v492 = vsel %vm456, %v441, 0.0
      %v493 = vadd.f32 %v491, %v492
      %v494 = vsel %vm456, %v442, 0.0
      %v495 = vadd.f32 %v493, %v494
      %v496 = vsel %vm456, %v443, 0.0
      %v497 = vadd.f32 %v495, %v496
      %v498 = vsel %vm456, %v444, 0.0
      %v499 = vadd.f32 %v497, %v498
      %v500 = vsel %vm456, %v445, 0.0
      %v501 = vadd.f32 %v499, %v500
      %v502 = vsel %vm456, %v446, 0.0
      %v503 = vadd.f32 %v501, %v502
      %v504 = vsel %vm456, %v447, 0.0
      %v505 = vadd.f32 %v503, %v504
      %v506 = vsel %vm456, %v448, 0.0
      %v507 = vadd.f32 %v505, %v506
      %v508 = vsel %vm456, %v449, 0.0
      %v509 = vadd.f32 %v507, %v508
      %v510 = vsel %vm456, %v450, 0.0
      %v511 = vadd.f32 %v509, %v510
      %v512 = vsel %vm456, %v451, 0.0
      %v513 = vadd.f32 %v511, %v512
      %v514 = vsel %vm456, %v452, 0.0
      %v515 = vadd.f32 %v513, %v514
      %v516 = vsel %vm456, %v453, 0.0
      %v517 = vadd.f32 %v515, %v516
      %v518 = vsel %vm456, %v454, 0.0
      %v519 = vadd.f32 %v517, %v518
      %v520 = vadd.f32 %v455, %v519
      %521 = vst.msk [vmem:[%s183] sm:$0xff] %vm456, %v520
      %v522 = vld [vmem:[%s187] sm:$0xff]
      %v523 = vmul.f32 %v423, %v423
      %v524 = vmul.f32 %v424, %v424
      %v525 = vmul.f32 %v425, %v425
      %v526 = vmul.f32 %v426, %v426
      %v527 = vmul.f32 %v427, %v427
      %v528 = vmul.f32 %v428, %v428
      %v529 = vmul.f32 %v429, %v429
      %v530 = vmul.f32 %v430, %v430
      %v531 = vmul.f32 %v431, %v431
      %v532 = vmul.f32 %v432, %v432
      %v533 = vmul.f32 %v433, %v433
      %v534 = vmul.f32 %v434, %v434
      %v535 = vmul.f32 %v435, %v435
      %v536 = vmul.f32 %v436, %v436
      %v537 = vmul.f32 %v437, %v437
      %v538 = vmul.f32 %v438, %v438
      %v539 = vmul.f32 %v439, %v439
      %v540 = vmul.f32 %v440, %v440
      %v541 = vmul.f32 %v441, %v441
      %v542 = vmul.f32 %v442, %v442
      %v543 = vmul.f32 %v443, %v443
      %v544 = vmul.f32 %v444, %v444
      %v545 = vmul.f32 %v445, %v445
      %v546 = vmul.f32 %v446, %v446
      %v547 = vmul.f32 %v447, %v447
      %v548 = vmul.f32 %v448, %v448
      %v549 = vmul.f32 %v449, %v449
      %v550 = vmul.f32 %v450, %v450
      %v551 = vmul.f32 %v451, %v451
      %v552 = vmul.f32 %v452, %v452
      %v553 = vmul.f32 %v453, %v453
      %v554 = vmul.f32 %v454, %v454
      %v555 = vsel %vm456, %v523, 0.0
      %v556 = vsel %vm456, %v524, 0.0
      %v557 = vadd.f32 %v555, %v556
      %v558 = vsel %vm456, %v525, 0.0
      %v559 = vadd.f32 %v557, %v558
      %v560 = vsel %vm456, %v526, 0.0
      %v561 = vadd.f32 %v559, %v560
      %v562 = vsel %vm456, %v527, 0.0
      %v563 = vadd.f32 %v561, %v562
      %v564 = vsel %vm456, %v528, 0.0
      %v565 = vadd.f32 %v563, %v564
      %v566 = vsel %vm456, %v529, 0.0
      %v567 = vadd.f32 %v565, %v566
      %v568 = vsel %vm456, %v530, 0.0
      %v569 = vadd.f32 %v567, %v568
      %v570 = vsel %vm456, %v531, 0.0
      %v571 = vadd.f32 %v569, %v570
      %v572 = vsel %vm456, %v532, 0.0
      %v573 = vadd.f32 %v571, %v572
      %v574 = vsel %vm456, %v533, 0.0
      %v575 = vadd.f32 %v573, %v574
      %v576 = vsel %vm456, %v534, 0.0
      %v577 = vadd.f32 %v575, %v576
      %v578 = vsel %vm456, %v535, 0.0
      %v579 = vadd.f32 %v577, %v578
      %v580 = vsel %vm456, %v536, 0.0
      %v581 = vadd.f32 %v579, %v580
      %v582 = vsel %vm456, %v537, 0.0
      %v583 = vadd.f32 %v581, %v582
      %v584 = vsel %vm456, %v538, 0.0
      %v585 = vadd.f32 %v583, %v584
      %v586 = vsel %vm456, %v539, 0.0
      %v587 = vadd.f32 %v585, %v586
      %v588 = vsel %vm456, %v540, 0.0
      %v589 = vadd.f32 %v587, %v588
      %v590 = vsel %vm456, %v541, 0.0
      %v591 = vadd.f32 %v589, %v590
      %v592 = vsel %vm456, %v542, 0.0
      %v593 = vadd.f32 %v591, %v592
      %v594 = vsel %vm456, %v543, 0.0
      %v595 = vadd.f32 %v593, %v594
      %v596 = vsel %vm456, %v544, 0.0
      %v597 = vadd.f32 %v595, %v596
      %v598 = vsel %vm456, %v545, 0.0
      %v599 = vadd.f32 %v597, %v598
      %v600 = vsel %vm456, %v546, 0.0
      %v601 = vadd.f32 %v599, %v600
      %v602 = vsel %vm456, %v547, 0.0
      %v603 = vadd.f32 %v601, %v602
      %v604 = vsel %vm456, %v548, 0.0
      %v605 = vadd.f32 %v603, %v604
      %v606 = vsel %vm456, %v549, 0.0
      %v607 = vadd.f32 %v605, %v606
      %v608 = vsel %vm456, %v550, 0.0
      %v609 = vadd.f32 %v607, %v608
      %v610 = vsel %vm456, %v551, 0.0
      %v611 = vadd.f32 %v609, %v610
      %v612 = vsel %vm456, %v552, 0.0
      %v613 = vadd.f32 %v611, %v612
      %v614 = vsel %vm456, %v553, 0.0
      %v615 = vadd.f32 %v613, %v614
      %v616 = vsel %vm456, %v554, 0.0
      %v617 = vadd.f32 %v615, %v616
      %v618 = vadd.f32 %v522, %v617
      %619 = vst.msk [vmem:[%s187] sm:$0xff] %vm456, %v618
      %p620 = scmp.lt.s32.totalorder %s18, 1
      %s621 = scalar_select %p620, %s18, 1
      %s622 = smul.addr %s621, 8
      %s623 = scalar_lea.vmem %s1, %s622
      %p624 = scmp.lt.s32.totalorder %s18, 1
      %s625 = scalar_select %p624, %s18, 1
      %s626 = smul.addr %s625, 8
      %s627 = scalar_lea.vmem %s2, %s626
      // Predicated region
      $region29: #{upsample_layer_forward_nhwc.2} parent=23 // pred_check
        %p628 = pneg %p76
      $region30: #{upsample_layer_forward_nhwc.2} parent=23 // pred_check_branch
        %630 = sbr.rel (%p628) target = $region32
      $region31: #{upsample_layer_forward_nhwc.2} parent=23 // pred_region
        _
      $region32: #{upsample_layer_forward_nhwc.2} parent=23 // pred_fallthru
        _
      // Predicated region
      $region33: #{upsample_layer_forward_nhwc.2} parent=23 // pred_check
        %p631 = pneg %p102
      $region34: #{upsample_layer_forward_nhwc.2} parent=23 // pred_check_branch
        %633 = sbr.rel (%p631) target = $region36
      $region35: #{upsample_layer_forward_nhwc.2} parent=23 // pred_region
        _
      $region36: #{upsample_layer_forward_nhwc.2} parent=23 // pred_fallthru
        _
    $region24: #{upsample_layer_forward_nhwc.2} parent=5 // pred_fallthru
      _
    %p634 = scmp.le.s32.totalorder 2, %s9
    // Predicated region
    $region37: #{upsample_layer_forward_nhwc.2} parent=5 // pred_check
      %p635 = pneg %p634
    $region38: #{upsample_layer_forward_nhwc.2} parent=5 // pred_check_branch
      %637 = sbr.rel (%p635) target = $region40
    $region39: #{upsample_layer_forward_nhwc.2} parent=5 // pred_region
      %s638 = ssub.s32 %s9, 2
      // Predicated region
      $region41: #{upsample_layer_forward_nhwc.2} parent=39 // pred_check
        %p639 = pneg %p82
      $region42: #{upsample_layer_forward_nhwc.2} parent=39 // pred_check_branch
        %641 = sbr.rel (%p639) target = $region44
      $region43: #{upsample_layer_forward_nhwc.2} parent=39 // pred_region
        %p642 = scmp.lt.s32.totalorder %s20, 1
        %s643 = scalar_select %p642, %s20, 1
        %s644 = smul.addr %s643, 8
        %s645 = scalar_lea.vmem %s1, %s644
      $region44: #{upsample_layer_forward_nhwc.2} parent=39 // pred_fallthru
        _
      // Predicated region
      $region45: #{upsample_layer_forward_nhwc.2} parent=39 // pred_check
        %p646 = pneg %p108
      $region46: #{upsample_layer_forward_nhwc.2} parent=39 // pred_check_branch
        %648 = sbr.rel (%p646) target = $region48
      $region47: #{upsample_layer_forward_nhwc.2} parent=39 // pred_region
        %p649 = scmp.lt.s32.totalorder %s20, 1
        %s650 = scalar_select %p649, %s20, 1
        %s651 = smul.addr %s650, 8
        %s652 = scalar_lea.vmem %s2, %s651
      $region48: #{upsample_layer_forward_nhwc.2} parent=39 // pred_fallthru
        _
    $region40: #{upsample_layer_forward_nhwc.2} parent=5 // pred_fallthru
      _
  $region6: #{upsample_layer_forward_nhwc.2} parent=0 // loop_footer
    %s13 = sadd.s32 1, %s9
  $region7: #{upsample_layer_forward_nhwc.2} parent=0 // loop_footer_branch
    %8 = sbr.rel target = $region3
  $region8: #{upsample_layer_forward_nhwc.2} parent=0 // loop_exit
    _

// kernel: upsample_layer_forward_nhwc.3
$region0: #{upsample_layer_forward_nhwc.3}
  #allocation0 [shape = 'u32[]', space=smem, size = 0x4, offset = 0x4, fixed_abs, tag = 'smem constant byte address 0x4 - core index']
  #allocation1 [shape = 'u32[144,128]{1,0:T(1,128)}', space=vmem, size = 0x12000, scoped, tag = 'internal scratch']
  %s0 = inlined_call_operand.vmem [shape: bf16[32,16,4], index: 0, kind: input, shape index: {}]
  %s1 = inlined_call_operand.vmem [shape: f32[1,4], index: 1, kind: input, shape index: {}]
  %s2 = inlined_call_operand.vmem [shape: f32[1,4], index: 2, kind: input, shape index: {}]
  %s3 = inlined_call_operand.vmem [shape: bf16[4,32], index: 3, kind: input, shape index: {}]
  %s4 = inlined_call_operand.vmem [shape: f32[1,32], index: 4, kind: input, shape index: {}]
  %s5 = inlined_call_operand.vmem [shape: f32[32,2,16,16], index: 5, kind: input, shape index: {}]
  %s6 = inlined_call_operand.vmem [shape: f32[32,2,16,32], index: 6, kind: output, shape index: {}]
  %s7 = sld [smem:[#allocation0]]
  $region57: #{upsample_layer_forward_nhwc.3} parent=0
    _
  %s9 = ssub.s32 1, %s7
  %s10 = scalar_select 0, %s9, %s7
  loop: start=0, step=1, limit=4
  $region2: #{upsample_layer_forward_nhwc.3} parent=0 // loop_pre_header
    _
  $region3: #{upsample_layer_forward_nhwc.3} parent=0 // loop_header
    %s12 = sphi 0, %s16
    %p13 = scmp.ge.s32.totalorder %s12, 4
    %s22 = sphi 0, %s24
    %s25 = sphi 0, %s22
    %s26 = sphi 0, %s25
    %s42 = sphi 0, %s26
    %s46 = sphi 0, %s46
    %s48 = sphi 0, %s46
    %s49 = sphi 0, %s48
    %s63 = sphi 0, %s49
    %s67 = sphi 0, %s67
    %s69 = sphi 0, %s67
    %s70 = sphi 0, %s69
    %s84 = sphi 0, %s70
    %s88 = sphi 0, %s88
    %s90 = sphi 0, %s88
    %s91 = sphi 0, %s90
    %s105 = sphi 0, %s91
    %s109 = sphi 0, %s109
    %s111 = sphi 0, %s109
    %s112 = sphi 0, %s111
    %s126 = sphi 0, %s112
    %s132 = sphi 0, %s134
    %s135 = sphi 0, %s132
    %s136 = sphi 0, %s135
    %s152 = sphi 0, %s136
    %s158 = sphi 0, %s160
    %s161 = sphi 0, %s158
    %s162 = sphi 0, %s161
    %s178 = sphi 0, %s162
  $region4: #{upsample_layer_forward_nhwc.3} parent=0 // loop_header_branch
    %15 = sbr.rel (%p13) target = $region8
  $region5: #{upsample_layer_forward_nhwc.3} parent=0 // loop_body
    %s17 = ssub.s32 %s12, 1
    %s18 = ssub.s32 %s12, 2
    %s19 = sadd.s32 %s12, 1
    %s20 = ssub.s32 %s12, %s19
    %p21 = scmp.eq.s32.totalorder %s20, 0
    %s23 = sadd.s32 %s22, 1
    %s24 = scalar_select %p21, %s22, %s23
    %p27 = pneg %p21
    %p28 = scmp.eq.s32.totalorder %s12, 1
    %p29 = por %p27, %p28
    %p30 = scmp.ne.s32.totalorder %s22, %s25
    %p31 = scmp.eq.s32.totalorder %s12, 0
    %p32 = por %p30, %p31
    %p33 = scmp.ne.s32.totalorder %s22, %s25
    %p34 = scmp.eq.s32.totalorder %s17, 1
    %p35 = por %p33, %p34
    %p36 = scmp.ne.s32.totalorder %s25, %s26
    %p37 = scmp.eq.s32.totalorder %s17, 0
    %p38 = por %p36, %p37
    %p39 = scmp.ne.s32.totalorder %s25, %s26
    %p40 = scmp.eq.s32.totalorder %s18, 1
    %p41 = por %p39, %p40
    %p43 = scmp.ne.s32.totalorder %s26, %s42
    %p44 = scmp.eq.s32.totalorder %s18, 0
    %p45 = por %p43, %p44
    %s47 = sadd.s32 %s46, 1
    %p50 = scmp.eq.s32.totalorder %s12, 1
    %p51 = scmp.ne.s32.totalorder %s46, %s48
    %p52 = scmp.eq.s32.totalorder %s12, 0
    %p53 = por %p51, %p52
    %p54 = scmp.ne.s32.totalorder %s46, %s48
    %p55 = scmp.eq.s32.totalorder %s17, 1
    %p56 = por %p54, %p55
    %p57 = scmp.ne.s32.totalorder %s48, %s49
    %p58 = scmp.eq.s32.totalorder %s17, 0
    %p59 = por %p57, %p58
    %p60 = scmp.ne.s32.totalorder %s48, %s49
    %p61 = scmp.eq.s32.totalorder %s18, 1
    %p62 = por %p60, %p61
    %p64 = scmp.ne.s32.totalorder %s49, %s63
    %p65 = scmp.eq.s32.totalorder %s18, 0
    %p66 = por %p64, %p65
    %s68 = sadd.s32 %s67, 1
    %p71 = scmp.eq.s32.totalorder %s12, 1
    %p72 = scmp.ne.s32.totalorder %s67, %s69
    %p73 = scmp.eq.s32.totalorder %s12, 0
    %p74 = por %p72, %p73
    %p75 = scmp.ne.s32.totalorder %s67, %s69
    %p76 = scmp.eq.s32.totalorder %s17, 1
    %p77 = por %p75, %p76
    %p78 = scmp.ne.s32.totalorder %s69, %s70
    %p79 = scmp.eq.s32.totalorder %s17, 0
    %p80 = por %p78, %p79
    %p81 = scmp.ne.s32.totalorder %s69, %s70
    %p82 = scmp.eq.s32.totalorder %s18, 1
    %p83 = por %p81, %p82
    %p85 = scmp.ne.s32.totalorder %s70, %s84
    %p86 = scmp.eq.s32.totalorder %s18, 0
    %p87 = por %p85, %p86
    %s89 = sadd.s32 %s88, 1
    %p92 = scmp.eq.s32.totalorder %s12, 1
    %p93 = scmp.ne.s32.totalorder %s88, %s90
    %p94 = scmp.eq.s32.totalorder %s12, 0
    %p95 = por %p93, %p94
    %p96 = scmp.ne.s32.totalorder %s88, %s90
    %p97 = scmp.eq.s32.totalorder %s17, 1
    %p98 = por %p96, %p97
    %p99 = scmp.ne.s32.totalorder %s90, %s91
    %p100 = scmp.eq.s32.totalorder %s17, 0
    %p101 = por %p99, %p100
    %p102 = scmp.ne.s32.totalorder %s90, %s91
    %p103 = scmp.eq.s32.totalorder %s18, 1
    %p104 = por %p102, %p103
    %p106 = scmp.ne.s32.totalorder %s91, %s105
    %p107 = scmp.eq.s32.totalorder %s18, 0
    %p108 = por %p106, %p107
    %s110 = sadd.s32 %s109, 1
    %p113 = scmp.eq.s32.totalorder %s12, 1
    %p114 = scmp.ne.s32.totalorder %s109, %s111
    %p115 = scmp.eq.s32.totalorder %s12, 0
    %p116 = por %p114, %p115
    %p117 = scmp.ne.s32.totalorder %s109, %s111
    %p118 = scmp.eq.s32.totalorder %s17, 1
    %p119 = por %p117, %p118
    %p120 = scmp.ne.s32.totalorder %s111, %s112
    %p121 = scmp.eq.s32.totalorder %s17, 0
    %p122 = por %p120, %p121
    %p123 = scmp.ne.s32.totalorder %s111, %s112
    %p124 = scmp.eq.s32.totalorder %s18, 1
    %p125 = por %p123, %p124
    %p127 = scmp.ne.s32.totalorder %s112, %s126
    %p128 = scmp.eq.s32.totalorder %s18, 0
    %p129 = por %p127, %p128
    %s130 = ssub.s32 %s12, %s19
    %p131 = scmp.eq.s32.totalorder %s130, 0
    %s133 = sadd.s32 %s132, 1
    %s134 = scalar_select %p131, %s132, %s133
    %p137 = pneg %p131
    %p138 = scmp.eq.s32.totalorder %s12, 1
    %p139 = por %p137, %p138
    %p140 = scmp.ne.s32.totalorder %s132, %s135
    %p141 = scmp.eq.s32.totalorder %s12, 0
    %p142 = por %p140, %p141
    %p143 = scmp.ne.s32.totalorder %s132, %s135
    %p144 = scmp.eq.s32.totalorder %s17, 1
    %p145 = por %p143, %p144
    %p146 = scmp.ne.s32.totalorder %s135, %s136
    %p147 = scmp.eq.s32.totalorder %s17, 0
    %p148 = por %p146, %p147
    %p149 = scmp.ne.s32.totalorder %s135, %s136
    %p150 = scmp.eq.s32.totalorder %s18, 1
    %p151 = por %p149, %p150
    %p153 = scmp.ne.s32.totalorder %s136, %s152
    %p154 = scmp.eq.s32.totalorder %s18, 0
    %p155 = por %p153, %p154
    %s156 = ssub.s32 %s12, %s19
    %p157 = scmp.eq.s32.totalorder %s156, 0
    %s159 = sadd.s32 %s158, 1
    %s160 = scalar_select %p157, %s158, %s159
    %p163 = pneg %p157
    %p164 = scmp.eq.s32.totalorder %s12, 1
    %p165 = por %p163, %p164
    %p166 = scmp.ne.s32.totalorder %s158, %s161
    %p167 = scmp.eq.s32.totalorder %s12, 0
    %p168 = por %p166, %p167
    %p169 = scmp.ne.s32.totalorder %s158, %s161
    %p170 = scmp.eq.s32.totalorder %s17, 1
    %p171 = por %p169, %p170
    %p172 = scmp.ne.s32.totalorder %s161, %s162
    %p173 = scmp.eq.s32.totalorder %s17, 0
    %p174 = por %p172, %p173
    %p175 = scmp.ne.s32.totalorder %s161, %s162
    %p176 = scmp.eq.s32.totalorder %s18, 1
    %p177 = por %p175, %p176
    %p179 = scmp.ne.s32.totalorder %s162, %s178
    %p180 = scmp.eq.s32.totalorder %s18, 0
    %p181 = por %p179, %p180
    %p182 = scmp.le.s32.totalorder 1, %s12
    %p183 = scmp.lt.s32.totalorder %s12, 3
    %p184 = pnand %p182, %p183
    %p185 = pneg %p184
    // Predicated region
    $region9: #{upsample_layer_forward_nhwc.3} parent=5 // pred_check
      _
    $region10: #{upsample_layer_forward_nhwc.3} parent=5 // pred_check_branch
      %187 = sbr.rel (%p184) target = $region12
    $region11: #{upsample_layer_forward_nhwc.3} parent=5 // pred_region
      %s188 = ssub.s32 %s12, 1
      // Predicated region
      $region13: #{upsample_layer_forward_nhwc.3} parent=11 // pred_check
        %p189 = pneg %p59
      $region14: #{upsample_layer_forward_nhwc.3} parent=11 // pred_check_branch
        %191 = sbr.rel (%p189) target = $region16
      $region15: #{upsample_layer_forward_nhwc.3} parent=11 // pred_region
        _
      $region16: #{upsample_layer_forward_nhwc.3} parent=11 // pred_fallthru
        _
      // Predicated region
      $region17: #{upsample_layer_forward_nhwc.3} parent=11 // pred_check
        %p192 = pneg %p80
      $region18: #{upsample_layer_forward_nhwc.3} parent=11 // pred_check_branch
        %194 = sbr.rel (%p192) target = $region20
      $region19: #{upsample_layer_forward_nhwc.3} parent=11 // pred_region
        _
      $region20: #{upsample_layer_forward_nhwc.3} parent=11 // pred_fallthru
        _
      // Predicated region
      $region21: #{upsample_layer_forward_nhwc.3} parent=11 // pred_check
        %p195 = pneg %p101
      $region22: #{upsample_layer_forward_nhwc.3} parent=11 // pred_check_branch
        %197 = sbr.rel (%p195) target = $region24
      $region23: #{upsample_layer_forward_nhwc.3} parent=11 // pred_region
        _
      $region24: #{upsample_layer_forward_nhwc.3} parent=11 // pred_fallthru
        _
      // Predicated region
      $region25: #{upsample_layer_forward_nhwc.3} parent=11 // pred_check
        %p198 = pneg %p122
      $region26: #{upsample_layer_forward_nhwc.3} parent=11 // pred_check_branch
        %200 = sbr.rel (%p198) target = $region28
      $region27: #{upsample_layer_forward_nhwc.3} parent=11 // pred_region
        _
      $region28: #{upsample_layer_forward_nhwc.3} parent=11 // pred_fallthru
        _
    $region12: #{upsample_layer_forward_nhwc.3} parent=5 // pred_fallthru
      _
    %p201 = scmp.lt.s32.totalorder %s12, 2
    // Predicated region
    $region29: #{upsample_layer_forward_nhwc.3} parent=5 // pred_check
      %p202 = pneg %p201
    $region30: #{upsample_layer_forward_nhwc.3} parent=5 // pred_check_branch
      %204 = sbr.rel (%p202) target = $region32
    $region31: #{upsample_layer_forward_nhwc.3} parent=5 // pred_region
      // Predicated region
      $region33: #{upsample_layer_forward_nhwc.3} parent=31 // pred_check
        %p205 = pneg %p32
      $region34: #{upsample_layer_forward_nhwc.3} parent=31 // pred_check_branch
        %207 = sbr.rel (%p205) target = $region36
      $region35: #{upsample_layer_forward_nhwc.3} parent=31 // pred_region
        %s208 = smul.u32 16, %s12
        %p209 = scmp.lt.s32.totalorder %s208, 31
        %s210 = scalar_select %p209, %s208, 31
        %s211 = smul.addr %s210, 2
        %s212 = smul.addr %s211, 4
        %s213 = scalar_lea.vmem %s0, %s212
        %s214 = smul.u32 16, %s12
      $region36: #{upsample_layer_forward_nhwc.3} parent=31 // pred_fallthru
        _
      // Predicated region
      $region37: #{upsample_layer_forward_nhwc.3} parent=31 // pred_check
        %p215 = pneg %p142
      $region38: #{upsample_layer_forward_nhwc.3} parent=31 // pred_check_branch
        %217 = sbr.rel (%p215) target = $region40
      $region39: #{upsample_layer_forward_nhwc.3} parent=31 // pred_region
        %s218 = smul.u32 16, %s12
        %p219 = scmp.lt.s32.totalorder %s218, 31
        %s220 = scalar_select %p219, %s218, 31
        %s221 = smul.addr %s220, 4
        %s222 = smul.addr %s221, 8
        %s223 = scalar_lea.vmem %s5, %s222
        %s224 = smul.u32 16, %s12
      $region40: #{upsample_layer_forward_nhwc.3} parent=31 // pred_fallthru
        _
    $region32: #{upsample_layer_forward_nhwc.3} parent=5 // pred_fallthru
      _
    %p225 = scmp.le.s32.totalorder 1, %s12
    %p226 = scmp.lt.s32.totalorder %s12, 3
    %p227 = pnand %p225, %p226
    %p228 = pneg %p227
    // Predicated region
    $region41: #{upsample_layer_forward_nhwc.3} parent=5 // pred_check
      _
    $region42: #{upsample_layer_forward_nhwc.3} parent=5 // pred_check_branch
      %230 = sbr.rel (%p227) target = $region44
    $region43: #{upsample_layer_forward_nhwc.3} parent=5 // pred_region
      %s231 = ssub.s32 %s12, 1
      %s232 = smul.u32 16, %s17
      %p233 = scmp.lt.s32.totalorder %s232, 31
      %s234 = scalar_select %p233, %s232, 31
      %s235 = smul.addr %s234, 2
      %s236 = smul.addr %s235, 4
      %s237 = scalar_lea.vmem %s0, %s236
      %p238 = pneg %p38
      %p239 = pneg %p35
      %p240 = pneg %p59
      %p241 = pneg %p56
      %p242 = pneg %p80
      %p243 = pneg %p77
      %p244 = pneg %p101
      %p245 = pneg %p98
      %p246 = pneg %p122
      %p247 = pneg %p119
      %s248 = smul.u32 16, %s17
      %p249 = scmp.lt.s32.totalorder %s248, 31
      %s250 = scalar_select %p249, %s248, 31
      %s251 = smul.addr %s250, 4
      %s252 = smul.addr %s251, 8
      %s253 = scalar_lea.vmem %s5, %s252
      %p254 = pneg %p148
      %p255 = pneg %p145
      %p256 = pneg %p174
      %p257 = pneg %p171
      %s258 = smul.u32 16, %s17
      %p259 = scmp.lt.s32.totalorder %s258, 31
      %s260 = scalar_select %p259, %s258, 31
      %s261 = smul.addr %s260, 4
      %s262 = smul.addr %s261, 8
      %s263 = scalar_lea.vmem %s6, %s262
      %s264 = smul.u32 16, %s17
      %p265 = scmp.lt.s32.totalorder %s264, 31
      %s266 = scalar_select %p265, %s264, 31
      %s267 = smul.addr %s266, 2
      %s268 = smul.addr %s267, 4
      %s269 = scalar_lea.vmem %s0, %s268
      %s270 = smul.u32 16, %s17
      %s271 = smul.u32 16, %s17
      %p272 = scmp.lt.s32.totalorder %s271, 31
      %s273 = scalar_select %p272, %s271, 31
      %s274 = smul.addr %s273, 4
      %s275 = smul.addr %s274, 8
      %s276 = scalar_lea.vmem %s5, %s275
      %s277 = smul.u32 16, %s17
      %s278 = smul.u32 16, %s17
      %p279 = scmp.lt.s32.totalorder %s278, 31
      %s280 = scalar_select %p279, %s278, 31
      %s281 = smul.addr %s280, 4
      %s282 = smul.addr %s281, 8
      %s283 = scalar_lea.vmem %s6, %s282
      %s284 = smul.u32 16, %s17
      %s286 = smul.u32 %s17, 16
      %v287 = vstv %s286
      %v288 = vadd.s32 %v287, 1
      %v289 = vadd.s32 %v287, 2
      %v290 = vadd.s32 %v287, 3
      %v291 = vadd.s32 %v287, 4
      %v292 = vadd.s32 %v287, 5
      %v293 = vadd.s32 %v287, 6
      %v294 = vadd.s32 %v287, 7
      %v295 = vadd.s32 %v287, 8
      %v296 = vadd.s32 %v287, 9
      %v297 = vadd.s32 %v287, 10
      %v298 = vadd.s32 %v287, 11
      %v299 = vadd.s32 %v287, 12
      %v300 = vadd.s32 %v287, 13
      %v301 = vadd.s32 %v287, 14
      %v302 = vadd.s32 %v287, 15
      %vm303 = vcmp.lt.s32.totalorder %v287, 32
      %vm304 = vcmp.lt.s32.totalorder %v288, 32
      %vm305 = vcmp.lt.s32.totalorder %v289, 32
      %vm306 = vcmp.lt.s32.totalorder %v290, 32
      %vm307 = vcmp.lt.s32.totalorder %v291, 32
      %vm308 = vcmp.lt.s32.totalorder %v292, 32
      %vm309 = vcmp.lt.s32.totalorder %v293, 32
      %vm310 = vcmp.lt.s32.totalorder %v294, 32
      %vm311 = vcmp.lt.s32.totalorder %v295, 32
      %vm312 = vcmp.lt.s32.totalorder %v296, 32
      %vm313 = vcmp.lt.s32.totalorder %v297, 32
      %vm314 = vcmp.lt.s32.totalorder %v298, 32
      %vm315 = vcmp.lt.s32.totalorder %v299, 32
      %vm316 = vcmp.lt.s32.totalorder %v300, 32
      %vm317 = vcmp.lt.s32.totalorder %v301, 32
      %vm318 = vcmp.lt.s32.totalorder %v302, 32
      %v319 = vld [vmem:[%s269] sm:$0xf]
      %v320 = vld [vmem:[%s269 + $0x4] sm:$0xf]
      %v321 = vld [vmem:[%s269 + $0x8] sm:$0xf]
      %v322 = vld [vmem:[%s269 + $0xc] sm:$0xf]
      %v323 = vld [vmem:[%s269 + $0x10] sm:$0xf]
      %v324 = vld [vmem:[%s269 + $0x14] sm:$0xf]
      %v325 = vld [vmem:[%s269 + $0x18] sm:$0xf]
      %v326 = vld [vmem:[%s269 + $0x1c] sm:$0xf]
      %v327 = vld [vmem:[%s269 + $0x20] sm:$0xf]
      %v328 = vld [vmem:[%s269 + $0x24] sm:$0xf]
      %v329 = vld [vmem:[%s269 + $0x28] sm:$0xf]
      %v330 = vld [vmem:[%s269 + $0x2c] sm:$0xf]
      %v331 = vld [vmem:[%s269 + $0x30] sm:$0xf]
      %v332 = vld [vmem:[%s269 + $0x34] sm:$0xf]
      %v333 = vld [vmem:[%s269 + $0x38] sm:$0xf]
      %v334 = vld [vmem:[%s269 + $0x3c] sm:$0xf]
      %v335 = vld [vmem:[%s269 + $0x40] sm:$0xf]
      %v336 = vld [vmem:[%s269 + $0x44] sm:$0xf]
      %v337 = vld [vmem:[%s269 + $0x48] sm:$0xf]
      %v338 = vld [vmem:[%s269 + $0x4c] sm:$0xf]
      %v339 = vld [vmem:[%s269 + $0x50] sm:$0xf]
      %v340 = vld [vmem:[%s269 + $0x54] sm:$0xf]
      %v341 = vld [vmem:[%s269 + $0x58] sm:$0xf]
      %v342 = vld [vmem:[%s269 + $0x5c] sm:$0xf]
      %v343 = vld [vmem:[%s269 + $0x60] sm:$0xf]
      %v344 = vld [vmem:[%s269 + $0x64] sm:$0xf]
      %v345 = vld [vmem:[%s269 + $0x68] sm:$0xf]
      %v346 = vld [vmem:[%s269 + $0x6c] sm:$0xf]
      %v347 = vld [vmem:[%s269 + $0x70] sm:$0xf]
      %v348 = vld [vmem:[%s269 + $0x74] sm:$0xf]
      %v349 = vld [vmem:[%s269 + $0x78] sm:$0xf]
      %v350 = vld [vmem:[%s269 + $0x7c] sm:$0xf]
      %v351 = vunpack.c.l.bf16 %v319
      %v352 = vunpack.c.l.bf16 %v320
      %v353 = vunpack.c.l.bf16 %v321
      %v354 = vunpack.c.l.bf16 %v322
      %v355 = vunpack.c.l.bf16 %v323
      %v356 = vunpack.c.l.bf16 %v324
      %v357 = vunpack.c.l.bf16 %v325
      %v358 = vunpack.c.l.bf16 %v326
      %v359 = vunpack.c.l.bf16 %v327
      %v360 = vunpack.c.l.bf16 %v328
      %v361 = vunpack.c.l.bf16 %v329
      %v362 = vunpack.c.l.bf16 %v330
      %v363 = vunpack.c.l.bf16 %v331
      %v364 = vunpack.c.l.bf16 %v332
      %v365 = vunpack.c.l.bf16 %v333
      %v366 = vunpack.c.l.bf16 %v334
      %v367 = vunpack.c.l.bf16 %v335
      %v368 = vunpack.c.l.bf16 %v336
      %v369 = vunpack.c.l.bf16 %v337
      %v370 = vunpack.c.l.bf16 %v338
      %v371 = vunpack.c.l.bf16 %v339
      %v372 = vunpack.c.l.bf16 %v340
      %v373 = vunpack.c.l.bf16 %v341
      %v374 = vunpack.c.l.bf16 %v342
      %v375 = vunpack.c.l.bf16 %v343
      %v376 = vunpack.c.l.bf16 %v344
      %v377 = vunpack.c.l.bf16 %v345
      %v378 = vunpack.c.l.bf16 %v346
      %v379 = vunpack.c.l.bf16 %v347
      %v380 = vunpack.c.l.bf16 %v348
      %v381 = vunpack.c.l.bf16 %v349
      %v382 = vunpack.c.l.bf16 %v350
      %v383 = vsel %vm303, 1, 0
      %v384 = vsel %vm304, 1, 0
      %v385 = vsel %vm305, 1, 0
      %v386 = vsel %vm306, 1, 0
      %v387 = vsel %vm307, 1, 0
      %v388 = vsel %vm308, 1, 0
      %v389 = vsel %vm309, 1, 0
      %v390 = vsel %vm310, 1, 0
      %v391 = vsel %vm311, 1, 0
      %v392 = vsel %vm312, 1, 0
      %v393 = vsel %vm313, 1, 0
      %v394 = vsel %vm314, 1, 0
      %v395 = vsel %vm315, 1, 0
      %v396 = vsel %vm316, 1, 0
      %v397 = vsel %vm317, 1, 0
      %v398 = vsel %vm318, 1, 0
      %vm399 = vcmp.eq.s32.totalorder %v383, 1
      %vm400 = vcmp.eq.s32.totalorder %v384, 1
      %vm401 = vcmp.eq.s32.totalorder %v385, 1
      %vm402 = vcmp.eq.s32.totalorder %v386, 1
      %vm403 = vcmp.eq.s32.totalorder %v387, 1
      %vm404 = vcmp.eq.s32.totalorder %v388, 1
      %vm405 = vcmp.eq.s32.totalorder %v389, 1
      %vm406 = vcmp.eq.s32.totalorder %v390, 1
      %vm407 = vcmp.eq.s32.totalorder %v391, 1
      %vm408 = vcmp.eq.s32.totalorder %v392, 1
      %vm409 = vcmp.eq.s32.totalorder %v393, 1
      %vm410 = vcmp.eq.s32.totalorder %v394, 1
      %vm411 = vcmp.eq.s32.totalorder %v395, 1
      %vm412 = vcmp.eq.s32.totalorder %v396, 1
      %vm413 = vcmp.eq.s32.totalorder %v397, 1
      %vm414 = vcmp.eq.s32.totalorder %v398, 1
      %v415 = vsel %vm399, %v351, 0.0
      %v416 = vsel %vm399, %v352, 0.0
      %v417 = vsel %vm400, %v353, 0.0
      %v418 = vsel %vm400, %v354, 0.0
      %v419 = vsel %vm401, %v355, 0.0
      %v420 = vsel %vm401, %v356, 0.0
      %v421 = vsel %vm402, %v357, 0.0
      %v422 = vsel %vm402, %v358, 0.0
      %v423 = vsel %vm403, %v359, 0.0
      %v424 = vsel %vm403, %v360, 0.0
      %v425 = vsel %vm404, %v361, 0.0
      %v426 = vsel %vm404, %v362, 0.0
      %v427 = vsel %vm405, %v363, 0.0
      %v428 = vsel %vm405, %v364, 0.0
      %v429 = vsel %vm406, %v365, 0.0
      %v430 = vsel %vm406, %v366, 0.0
      %v431 = vsel %vm407, %v367, 0.0
      %v432 = vsel %vm407, %v368, 0.0
      %v433 = vsel %vm408, %v369, 0.0
      %v434 = vsel %vm408, %v370, 0.0
      %v435 = vsel %vm409, %v371, 0.0
      %v436 = vsel %vm409, %v372, 0.0
      %v437 = vsel %vm410, %v373, 0.0
      %v438 = vsel %vm410, %v374, 0.0
      %v439 = vsel %vm411, %v375, 0.0
      %v440 = vsel %vm411, %v376, 0.0
      %v441 = vsel %vm412, %v377, 0.0
      %v442 = vsel %vm412, %v378, 0.0
      %v443 = vsel %vm413, %v379, 0.0
      %v444 = vsel %vm413, %v380, 0.0
      %v445 = vsel %vm414, %v381, 0.0
      %v446 = vsel %vm414, %v382, 0.0
      %v447 = vld [vmem:[%s1] sm:$0x1]
      %v449 = vlaneseq
      %v450 = vshrl.u32 %v449, 7
      %v451 = vsub.s32 0, %v450
      %v452 = vrot.slane %v447, %v451
      %v454 = vmul.f32 %v415, %v452
      %v455 = vmul.f32 %v416, %v452
      %v456 = vmul.f32 %v417, %v452
      %v457 = vmul.f32 %v418, %v452
      %v458 = vmul.f32 %v419, %v452
      %v459 = vmul.f32 %v420, %v452
      %v460 = vmul.f32 %v421, %v452
      %v461 = vmul.f32 %v422, %v452
      %v462 = vmul.f32 %v423, %v452
      %v463 = vmul.f32 %v424, %v452
      %v464 = vmul.f32 %v425, %v452
      %v465 = vmul.f32 %v426, %v452
      %v466 = vmul.f32 %v427, %v452
      %v467 = vmul.f32 %v428, %v452
      %v468 = vmul.f32 %v429, %v452
      %v469 = vmul.f32 %v430, %v452
      %v470 = vmul.f32 %v431, %v452
      %v471 = vmul.f32 %v432, %v452
      %v472 = vmul.f32 %v433, %v452
      %v473 = vmul.f32 %v434, %v452
      %v474 = vmul.f32 %v435, %v452
      %v475 = vmul.f32 %v436, %v452
      %v476 = vmul.f32 %v437, %v452
      %v477 = vmul.f32 %v438, %v452
      %v478 = vmul.f32 %v439, %v452
      %v479 = vmul.f32 %v440, %v452
      %v480 = vmul.f32 %v441, %v452
      %v481 = vmul.f32 %v442, %v452
      %v482 = vmul.f32 %v443, %v452
      %v483 = vmul.f32 %v444, %v452
      %v484 = vmul.f32 %v445, %v452
      %v485 = vmul.f32 %v446, %v452
      %v486 = vld [vmem:[%s2] sm:$0x1]
      %v488 = vlaneseq
      %v489 = vshrl.u32 %v488, 7
      %v490 = vsub.s32 0, %v489
      %v491 = vrot.slane %v486, %v490
      %v493 = vadd.f32 %v454, %v491
      %v494 = vadd.f32 %v455, %v491
      %v495 = vadd.f32 %v456, %v491
      %v496 = vadd.f32 %v457, %v491
      %v497 = vadd.f32 %v458, %v491
      %v498 = vadd.f32 %v459, %v491
      %v499 = vadd.f32 %v460, %v491
      %v500 = vadd.f32 %v461, %v491
      %v501 = vadd.f32 %v462, %v491
      %v502 = vadd.f32 %v463, %v491
      %v503 = vadd.f32 %v464, %v491
      %v504 = vadd.f32 %v465, %v491
      %v505 = vadd.f32 %v466, %v491
      %v506 = vadd.f32 %v467, %v491
      %v507 = vadd.f32 %v468, %v491
      %v508 = vadd.f32 %v469, %v491
      %v509 = vadd.f32 %v470, %v491
      %v510 = vadd.f32 %v471, %v491
      %v511 = vadd.f32 %v472, %v491
      %v512 = vadd.f32 %v473, %v491
      %v513 = vadd.f32 %v474, %v491
      %v514 = vadd.f32 %v475, %v491
      %v515 = vadd.f32 %v476, %v491
      %v516 = vadd.f32 %v477, %v491
      %v517 = vadd.f32 %v478, %v491
      %v518 = vadd.f32 %v479, %v491
      %v519 = vadd.f32 %v480, %v491
      %v520 = vadd.f32 %v481, %v491
      %v521 = vadd.f32 %v482, %v491
      %v522 = vadd.f32 %v483, %v491
      %v523 = vadd.f32 %v484, %v491
      %v524 = vadd.f32 %v485, %v491
      %v525 = vmax.f32 %v493, 0.0
      %v526 = vmax.f32 %v494, 0.0
      %v527 = vmax.f32 %v495, 0.0
      %v528 = vmax.f32 %v496, 0.0
      %v529 = vmax.f32 %v497, 0.0
      %v530 = vmax.f32 %v498, 0.0
      %v531 = vmax.f32 %v499, 0.0
      %v532 = vmax.f32 %v500, 0.0
      %v533 = vmax.f32 %v501, 0.0
      %v534 = vmax.f32 %v502, 0.0
      %v535 = vmax.f32 %v503, 0.0
      %v536 = vmax.f32 %v504, 0.0
      %v537 = vmax.f32 %v505, 0.0
      %v538 = vmax.f32 %v506, 0.0
      %v539 = vmax.f32 %v507, 0.0
      %v540 = vmax.f32 %v508, 0.0
      %v541 = vmax.f32 %v509, 0.0
      %v542 = vmax.f32 %v510, 0.0
      %v543 = vmax.f32 %v511, 0.0
      %v544 = vmax.f32 %v512, 0.0
      %v545 = vmax.f32 %v513, 0.0
      %v546 = vmax.f32 %v514, 0.0
      %v547 = vmax.f32 %v515, 0.0
      %v548 = vmax.f32 %v516, 0.0
      %v549 = vmax.f32 %v517, 0.0
      %v550 = vmax.f32 %v518, 0.0
      %v551 = vmax.f32 %v519, 0.0
      %v552 = vmax.f32 %v520, 0.0
      %v553 = vmax.f32 %v521, 0.0
      %v554 = vmax.f32 %v522, 0.0
      %v555 = vmax.f32 %v523, 0.0
      %v556 = vmax.f32 %v524, 0.0
      %v557 = vpack.c.bf16 %v526, %v525
      %v558 = vpack.c.bf16 %v528, %v527
      %v559 = vpack.c.bf16 %v530, %v529
      %v560 = vpack.c.bf16 %v532, %v531
      %v561 = vpack.c.bf16 %v534, %v533
      %v562 = vpack.c.bf16 %v536, %v535
      %v563 = vpack.c.bf16 %v538, %v537
      %v564 = vpack.c.bf16 %v540, %v539
      %v565 = vpack.c.bf16 %v542, %v541
      %v566 = vpack.c.bf16 %v544, %v543
      %v567 = vpack.c.bf16 %v546, %v545
      %v568 = vpack.c.bf16 %v548, %v547
      %v569 = vpack.c.bf16 %v550, %v549
      %v570 = vpack.c.bf16 %v552, %v551
      %v571 = vpack.c.bf16 %v554, %v553
      %v572 = vpack.c.bf16 %v556, %v555
      %v573 = vld [vmem:[%s3] sm:$0x3]
      %v574 = vld [vmem:[%s4] sm:$0x1]
      %v576 = vlaneseq
      %v577 = vshrl.u32 %v576, 7
      %v578 = vsub.s32 0, %v577
      %v579 = vrot.slane %v574, %v578
      %vm581 = vcmask 31744
      %v583 = vsel %vm581, %v557, 0
      %v586 = vsel %vm581, %v558, 0
      %v589 = vsel %vm581, %v559, 0
      %v592 = vsel %vm581, %v560, 0
      %v595 = vsel %vm581, %v561, 0
      %v598 = vsel %vm581, %v562, 0
      %v601 = vsel %vm581, %v563, 0
      %v604 = vsel %vm581, %v564, 0
      %v607 = vsel %vm581, %v565, 0
      %v610 = vsel %vm581, %v566, 0
      %v613 = vsel %vm581, %v567, 0
      %v616 = vsel %vm581, %v568, 0
      %v619 = vsel %vm581, %v569, 0
      %v622 = vsel %vm581, %v570, 0
      %v625 = vsel %vm581, %v571, 0
      %v628 = vsel %vm581, %v572, 0
      %vm630 = vcmask 1041408
      %v632 = vsel %vm630, %v573, 0
      %634 = vmatprep.subr.bf16.mxu0 0
      %635 = vmatpush1.bf16.msra.mxu0 %v632
      %636 = vmatprep.subr.bf16.mxu0 0
      %637 = vmatpush1.bf16.msra.mxu0 0
      %638 = vmatprep.subr.bf16.mxu0 0
      %639 = vmatpush1.bf16.msra.mxu0 0
      %640 = vmatprep.subr.bf16.mxu0 0
      %641 = vmatpush1.bf16.msra.mxu0 0
      %642 = vmatprep.subr.bf16.mxu0 0
      %643 = vmatpush1.bf16.msra.mxu0 0
      %644 = vmatprep.subr.bf16.mxu0 0
      %645 = vmatpush1.bf16.msra.mxu0 0
      %646 = vmatprep.subr.bf16.mxu0 0
      %647 = vmatpush1.bf16.msra.mxu0 0
      %648 = vmatprep.subr.bf16.mxu0 0
      %649 = vmatpush1.bf16.msra.mxu0 0
      %650 = vmatprep.subr.bf16.mxu0 0
      %651 = vmatpush1.bf16.msra.mxu0 0
      %652 = vmatprep.subr.bf16.mxu0 0
      %653 = vmatpush1.bf16.msra.mxu0 0
      %654 = vmatprep.subr.bf16.mxu0 0
      %655 = vmatpush1.bf16.msra.mxu0 0
      %656 = vmatprep.subr.bf16.mxu0 0
      %657 = vmatpush1.bf16.msra.mxu0 0
      %658 = vmatprep.subr.bf16.mxu0 0
      %659 = vmatpush1.bf16.msra.mxu0 0
      %660 = vmatprep.subr.bf16.mxu0 0
      %661 = vmatpush1.bf16.msra.mxu0 0
      %662 = vmatprep.subr.bf16.mxu0 0
      %663 = vmatpush1.bf16.msra.mxu0 0
      %664 = vmatprep.subr.bf16.mxu0 0
      %665 = vmatpush1.bf16.msra.mxu0 0
      %666 = vmatprep.mubr.bf16.mxu0 0
      %667 = vmatmul.mubr.bf16.gmra.mrb[0].mxu0 %v583
      %v668 = vpop.f32.mrb[0].mxu0
      %v669 = vadd.f32 %v579, %v668
      %v670 = vpop.f32.mrb[0].mxu0
      %v671 = vpop.f32.mrb[0].mxu0
      %v672 = vadd.f32 %v579, %v671
      %v673 = vpop.f32.mrb[0].mxu0
      %674 = vmatprep.mubr.bf16.mxu0 0
      %675 = vmatmul.mubr.bf16.gmra.mrb[0].mxu0 %v586
      %v676 = vpop.f32.mrb[0].mxu0
      %v677 = vadd.f32 %v579, %v676
      %v678 = vpop.f32.mrb[0].mxu0
      %v679 = vpop.f32.mrb[0].mxu0
      %v680 = vadd.f32 %v579, %v679
      %v681 = vpop.f32.mrb[0].mxu0
      %682 = vmatprep.mubr.bf16.mxu0 0
      %683 = vmatmul.mubr.bf16.gmra.mrb[0].mxu0 %v589
      %v684 = vpop.f32.mrb[0].mxu0
      %v685 = vadd.f32 %v579, %v684
      %v686 = vpop.f32.mrb[0].mxu0
      %v687 = vpop.f32.mrb[0].mxu0
      %v688 = vadd.f32 %v579, %v687
      %v689 = vpop.f32.mrb[0].mxu0
      %690 = vmatprep.mubr.bf16.mxu0 0
      %691 = vmatmul.mubr.bf16.gmra.mrb[0].mxu0 %v592
      %v692 = vpop.f32.mrb[0].mxu0
      %v693 = vadd.f32 %v579, %v692
      %v694 = vpop.f32.mrb[0].mxu0
      %v695 = vpop.f32.mrb[0].mxu0
      %v696 = vadd.f32 %v579, %v695
      %v697 = vpop.f32.mrb[0].mxu0
      %698 = vmatprep.mubr.bf16.mxu0 0
      %699 = vmatmul.mubr.bf16.gmra.mrb[0].mxu0 %v595
      %v700 = vpop.f32.mrb[0].mxu0
      %v701 = vadd.f32 %v579, %v700
      %v702 = vpop.f32.mrb[0].mxu0
      %v703 = vpop.f32.mrb[0].mxu0
      %v704 = vadd.f32 %v579, %v703
      %v705 = vpop.f32.mrb[0].mxu0
      %706 = vmatprep.mubr.bf16.mxu0 0
      %707 = vmatmul.mubr.bf16.gmra.mrb[0].mxu0 %v598
      %v708 = vpop.f32.mrb[0].mxu0
      %v709 = vadd.f32 %v579, %v708
      %v710 = vpop.f32.mrb[0].mxu0
      %v711 = vpop.f32.mrb[0].mxu0
      %v712 = vadd.f32 %v579, %v711
      %v713 = vpop.f32.mrb[0].mxu0
      %714 = vmatprep.mubr.bf16.mxu0 0
      %715 = vmatmul.mubr.bf16.gmra.mrb[0].mxu0 %v601
      %v716 = vpop.f32.mrb[0].mxu0
      %v717 = vadd.f32 %v579, %v716
      %v718 = vpop.f32.mrb[0].mxu0
      %v719 = vpop.f32.mrb[0].mxu0
      %v720 = vadd.f32 %v579, %v719
      %v721 = vpop.f32.mrb[0].mxu0
      %722 = vmatprep.mubr.bf16.mxu0 0
      %723 = vmatmul.mubr.bf16.gmra.mrb[0].mxu0 %v604
      %v724 = vpop.f32.mrb[0].mxu0
      %v725 = vadd.f32 %v579, %v724
      %v726 = vpop.f32.mrb[0].mxu0
      %v727 = vpop.f32.mrb[0].mxu0
      %v728 = vadd.f32 %v579, %v727
      %v729 = vpop.f32.mrb[0].mxu0
      %730 = vmatprep.mubr.bf16.mxu0 0
      %731 = vmatmul.mubr.bf16.gmra.mrb[0].mxu0 %v607
      %v732 = vpop.f32.mrb[0].mxu0
      %v733 = vadd.f32 %v579, %v732
      %v734 = vpop.f32.mrb[0].mxu0
      %v735 = vpop.f32.mrb[0].mxu0
      %v736 = vadd.f32 %v579, %v735
      %v737 = vpop.f32.mrb[0].mxu0
      %738 = vmatprep.mubr.bf16.mxu0 0
      %739 = vmatmul.mubr.bf16.gmra.mrb[0].mxu0 %v610
      %v740 = vpop.f32.mrb[0].mxu0
      %v741 = vadd.f32 %v579, %v740
      %v742 = vpop.f32.mrb[0].mxu0
      %v743 = vpop.f32.mrb[0].mxu0
      %v744 = vadd.f32 %v579, %v743
      %v745 = vpop.f32.mrb[0].mxu0
      %746 = vmatprep.mubr.bf16.mxu0 0
      %747 = vmatmul.mubr.bf16.gmra.mrb[0].mxu0 %v613
      %v748 = vpop.f32.mrb[0].mxu0
      %v749 = vadd.f32 %v579, %v748
      %v750 = vpop.f32.mrb[0].mxu0
      %v751 = vpop.f32.mrb[0].mxu0
      %v752 = vadd.f32 %v579, %v751
      %v753 = vpop.f32.mrb[0].mxu0
      %754 = vmatprep.mubr.bf16.mxu0 0
      %755 = vmatmul.mubr.bf16.gmra.mrb[0].mxu0 %v616
      %v756 = vpop.f32.mrb[0].mxu0
      %v757 = vadd.f32 %v579, %v756
      %v758 = vpop.f32.mrb[0].mxu0
      %v759 = vpop.f32.mrb[0].mxu0
      %v760 = vadd.f32 %v579, %v759
      %v761 = vpop.f32.mrb[0].mxu0
      %762 = vmatprep.mubr.bf16.mxu0 0
      %763 = vmatmul.mubr.bf16.gmra.mrb[0].mxu0 %v619
      %v764 = vpop.f32.mrb[0].mxu0
      %v765 = vadd.f32 %v579, %v764
      %v766 = vpop.f32.mrb[0].mxu0
      %v767 = vpop.f32.mrb[0].mxu0
      %v768 = vadd.f32 %v579, %v767
      %v769 = vpop.f32.mrb[0].mxu0
      %770 = vmatprep.mubr.bf16.mxu0 0
      %771 = vmatmul.mubr.bf16.gmra.mrb[0].mxu0 %v622
      %v772 = vpop.f32.mrb[0].mxu0
      %v773 = vadd.f32 %v579, %v772
      %v774 = vpop.f32.mrb[0].mxu0
      %v775 = vpop.f32.mrb[0].mxu0
      %v776 = vadd.f32 %v579, %v775
      %v777 = vpop.f32.mrb[0].mxu0
      %778 = vmatprep.mubr.bf16.mxu0 0
      %779 = vmatmul.mubr.bf16.gmra.mrb[0].mxu0 %v625
      %v780 = vpop.f32.mrb[0].mxu0
      %v781 = vadd.f32 %v579, %v780
      %v782 = vpop.f32.mrb[0].mxu0
      %v783 = vpop.f32.mrb[0].mxu0
      %v784 = vadd.f32 %v579, %v783
      %v785 = vpop.f32.mrb[0].mxu0
      %786 = vmatprep.mubr.bf16.mxu0 0
      %787 = vmatmul.mubr.bf16.gmra.mrb[0].mxu0 %v628
      %v788 = vpop.f32.mrb[0].mxu0
      %v789 = vadd.f32 %v579, %v788
      %v790 = vpop.f32.mrb[0].mxu0
      %v791 = vpop.f32.mrb[0].mxu0
      %v792 = vadd.f32 %v579, %v791
      %v793 = vpop.f32.mrb[0].mxu0
      %794 = vdwg.mxu0
      %v795 = vld [vmem:[%s276] sm:$0xff]
      %v796 = vld [vmem:[%s276 + $0x8] sm:$0xff]
      %v797 = vld [vmem:[%s276 + $0x20] sm:$0xff]
      %v798 = vld [vmem:[%s276 + $0x28] sm:$0xff]
      %v799 = vld [vmem:[%s276 + $0x40] sm:$0xff]
      %v800 = vld [vmem:[%s276 + $0x48] sm:$0xff]
      %v801 = vld [vmem:[%s276 + $0x60] sm:$0xff]
      %v802 = vld [vmem:[%s276 + $0x68] sm:$0xff]
      %v803 = vld [vmem:[%s276 + $0x80] sm:$0xff]
      %v804 = vld [vmem:[%s276 + $0x88] sm:$0xff]
      %v805 = vld [vmem:[%s276 + $0xa0] sm:$0xff]
      %v806 = vld [vmem:[%s276 + $0xa8] sm:$0xff]
      %v807 = vld [vmem:[%s276 + $0xc0] sm:$0xff]
      %v808 = vld [vmem:[%s276 + $0xc8] sm:$0xff]
      %v809 = vld [vmem:[%s276 + $0xe0] sm:$0xff]
      %v810 = vld [vmem:[%s276 + $0xe8] sm:$0xff]
      %v811 = vld [vmem:[%s276 + $0x100] sm:$0xff]
      %v812 = vld [vmem:[%s276 + $0x108] sm:$0xff]
      %v813 = vld [vmem:[%s276 + $0x120] sm:$0xff]
      %v814 = vld [vmem:[%s276 + $0x128] sm:$0xff]
      %v815 = vld [vmem:[%s276 + $0x140] sm:$0xff]
      %v816 = vld [vmem:[%s276 + $0x148] sm:$0xff]
      %v817 = vld [vmem:[%s276 + $0x160] sm:$0xff]
      %v818 = vld [vmem:[%s276 + $0x168] sm:$0xff]
      %v819 = vld [vmem:[%s276 + $0x180] sm:$0xff]
      %v820 = vld [vmem:[%s276 + $0x188] sm:$0xff]
      %v821 = vld [vmem:[%s276 + $0x1a0] sm:$0xff]
      %v822 = vld [vmem:[%s276 + $0x1a8] sm:$0xff]
      %v823 = vld [vmem:[%s276 + $0x1c0] sm:$0xff]
      %v824 = vld [vmem:[%s276 + $0x1c8] sm:$0xff]
      %v825 = vld [vmem:[%s276 + $0x1e0] sm:$0xff]
      %v826 = vld [vmem:[%s276 + $0x1e8] sm:$0xff]
      %859 = vrot.lane.b32.xlu0 %v795, 8
      %v860 = vpop.permute.xlu0 %859
      %861 = vrot.lane.b32.xlu0 %v796, 8
      %v862 = vpop.permute.xlu0 %861
      %863 = vrot.lane.b32.xlu0 %v797, 8
      %v864 = vpop.permute.xlu0 %863
      %865 = vrot.lane.b32.xlu0 %v798, 8
      %v866 = vpop.permute.xlu0 %865
      %867 = vrot.lane.b32.xlu0 %v799, 8
      %v868 = vpop.permute.xlu0 %867
      %869 = vrot.lane.b32.xlu0 %v800, 8
      %v870 = vpop.permute.xlu0 %869
      %871 = vrot.lane.b32.xlu0 %v801, 8
      %v872 = vpop.permute.xlu0 %871
      %873 = vrot.lane.b32.xlu0 %v802, 8
      %v874 = vpop.permute.xlu0 %873
      %875 = vrot.lane.b32.xlu0 %v803, 8
      %v876 = vpop.permute.xlu0 %875
      %877 = vrot.lane.b32.xlu0 %v804, 8
      %v878 = vpop.permute.xlu0 %877
      %879 = vrot.lane.b32.xlu0 %v805, 8
      %v880 = vpop.permute.xlu0 %879
      %881 = vrot.lane.b32.xlu0 %v806, 8
      %v882 = vpop.permute.xlu0 %881
      %883 = vrot.lane.b32.xlu0 %v807, 8
      %v884 = vpop.permute.xlu0 %883
      %885 = vrot.lane.b32.xlu0 %v808, 8
      %v886 = vpop.permute.xlu0 %885
      %887 = vrot.lane.b32.xlu0 %v809, 8
      %v888 = vpop.permute.xlu0 %887
      %889 = vrot.lane.b32.xlu0 %v810, 8
      %v890 = vpop.permute.xlu0 %889
      %891 = vrot.lane.b32.xlu0 %v811, 8
      %v892 = vpop.permute.xlu0 %891
      %893 = vrot.lane.b32.xlu0 %v812, 8
      %v894 = vpop.permute.xlu0 %893
      %895 = vrot.lane.b32.xlu0 %v813, 8
      %v896 = vpop.permute.xlu0 %895
      %897 = vrot.lane.b32.xlu0 %v814, 8
      %v898 = vpop.permute.xlu0 %897
      %899 = vrot.lane.b32.xlu0 %v815, 8
      %v900 = vpop.permute.xlu0 %899
      %901 = vrot.lane.b32.xlu0 %v816, 8
      %v902 = vpop.permute.xlu0 %901
      %903 = vrot.lane.b32.xlu0 %v817, 8
      %v904 = vpop.permute.xlu0 %903
      %905 = vrot.lane.b32.xlu0 %v818, 8
      %v906 = vpop.permute.xlu0 %905
      %907 = vrot.lane.b32.xlu0 %v819, 8
      %v908 = vpop.permute.xlu0 %907
      %909 = vrot.lane.b32.xlu0 %v820, 8
      %v910 = vpop.permute.xlu0 %909
      %911 = vrot.lane.b32.xlu0 %v821, 8
      %v912 = vpop.permute.xlu0 %911
      %913 = vrot.lane.b32.xlu0 %v822, 8
      %v914 = vpop.permute.xlu0 %913
      %915 = vrot.lane.b32.xlu0 %v823, 8
      %v916 = vpop.permute.xlu0 %915
      %917 = vrot.lane.b32.xlu0 %v824, 8
      %v918 = vpop.permute.xlu0 %917
      %919 = vrot.lane.b32.xlu0 %v825, 8
      %v920 = vpop.permute.xlu0 %919
      %921 = vrot.lane.b32.xlu0 %v826, 8
      %v922 = vpop.permute.xlu0 %921
      %987 = vrot.lane.b32.xlu0 %v669, 8
      %v988 = vpop.permute.xlu0 %987
      %989 = vrot.lane.b32.xlu0 %v672, 8
      %v990 = vpop.permute.xlu0 %989
      %991 = vrot.lane.b32.xlu0 %v677, 8
      %v992 = vpop.permute.xlu0 %991
      %993 = vrot.lane.b32.xlu0 %v680, 8
      %v994 = vpop.permute.xlu0 %993
      %995 = vrot.lane.b32.xlu0 %v685, 8
      %v996 = vpop.permute.xlu0 %995
      %997 = vrot.lane.b32.xlu0 %v688, 8
      %v998 = vpop.permute.xlu0 %997
      %999 = vrot.lane.b32.xlu0 %v693, 8
      %v1000 = vpop.permute.xlu0 %999
      %1001 = vrot.lane.b32.xlu0 %v696, 8
      %v1002 = vpop.permute.xlu0 %1001
      %1003 = vrot.lane.b32.xlu0 %v701, 8
      %v1004 = vpop.permute.xlu0 %1003
      %1005 = vrot.lane.b32.xlu0 %v704, 8
      %v1006 = vpop.permute.xlu0 %1005
      %1007 = vrot.lane.b32.xlu0 %v709, 8
      %v1008 = vpop.permute.xlu0 %1007
      %1009 = vrot.lane.b32.xlu0 %v712, 8
      %v1010 = vpop.permute.xlu0 %1009
      %1011 = vrot.lane.b32.xlu0 %v717, 8
      %v1012 = vpop.permute.xlu0 %1011
      %1013 = vrot.lane.b32.xlu0 %v720, 8
      %v1014 = vpop.permute.xlu0 %1013
      %1015 = vrot.lane.b32.xlu0 %v725, 8
      %v1016 = vpop.permute.xlu0 %1015
      %1017 = vrot.lane.b32.xlu0 %v728, 8
      %v1018 = vpop.permute.xlu0 %1017
      %1019 = vrot.lane.b32.xlu0 %v733, 8
      %v1020 = vpop.permute.xlu0 %1019
      %1021 = vrot.lane.b32.xlu0 %v736, 8
      %v1022 = vpop.permute.xlu0 %1021
      %1023 = vrot.lane.b32.xlu0 %v741, 8
      %v1024 = vpop.permute.xlu0 %1023
      %1025 = vrot.lane.b32.xlu0 %v744, 8
      %v1026 = vpop.permute.xlu0 %1025
      %1027 = vrot.lane.b32.xlu0 %v749, 8
      %v1028 = vpop.permute.xlu0 %1027
      %1029 = vrot.lane.b32.xlu0 %v752, 8
      %v1030 = vpop.permute.xlu0 %1029
      %1031 = vrot.lane.b32.xlu0 %v757, 8
      %v1032 = vpop.permute.xlu0 %1031
      %1033 = vrot.lane.b32.xlu0 %v760, 8
      %v1034 = vpop.permute.xlu0 %1033
      %1035 = vrot.lane.b32.xlu0 %v765, 8
      %v1036 = vpop.permute.xlu0 %1035
      %1037 = vrot.lane.b32.xlu0 %v768, 8
      %v1038 = vpop.permute.xlu0 %1037
      %1039 = vrot.lane.b32.xlu0 %v773, 8
      %v1040 = vpop.permute.xlu0 %1039
      %1041 = vrot.lane.b32.xlu0 %v776, 8
      %v1042 = vpop.permute.xlu0 %1041
      %1043 = vrot.lane.b32.xlu0 %v781, 8
      %v1044 = vpop.permute.xlu0 %1043
      %1045 = vrot.lane.b32.xlu0 %v784, 8
      %v1046 = vpop.permute.xlu0 %1045
      %1047 = vrot.lane.b32.xlu0 %v789, 8
      %v1048 = vpop.permute.xlu0 %1047
      %1049 = vrot.lane.b32.xlu0 %v792, 8
      %v1050 = vpop.permute.xlu0 %1049
      %1083 = vrot.lane.b32.xlu0 %v795, 16
      %v1084 = vpop.permute.xlu0 %1083
      %1085 = vrot.lane.b32.xlu0 %v796, 16
      %v1086 = vpop.permute.xlu0 %1085
      %1087 = vrot.lane.b32.xlu0 %v797, 16
      %v1088 = vpop.permute.xlu0 %1087
      %1089 = vrot.lane.b32.xlu0 %v798, 16
      %v1090 = vpop.permute.xlu0 %1089
      %1091 = vrot.lane.b32.xlu0 %v799, 16
      %v1092 = vpop.permute.xlu0 %1091
      %1093 = vrot.lane.b32.xlu0 %v800, 16
      %v1094 = vpop.permute.xlu0 %1093
      %1095 = vrot.lane.b32.xlu0 %v801, 16
      %v1096 = vpop.permute.xlu0 %1095
      %1097 = vrot.lane.b32.xlu0 %v802, 16
      %v1098 = vpop.permute.xlu0 %1097
      %1099 = vrot.lane.b32.xlu0 %v803, 16
      %v1100 = vpop.permute.xlu0 %1099
      %1101 = vrot.lane.b32.xlu0 %v804, 16
      %v1102 = vpop.permute.xlu0 %1101
      %1103 = vrot.lane.b32.xlu0 %v805, 16
      %v1104 = vpop.permute.xlu0 %1103
      %1105 = vrot.lane.b32.xlu0 %v806, 16
      %v1106 = vpop.permute.xlu0 %1105
      %1107 = vrot.lane.b32.xlu0 %v807, 16
      %v1108 = vpop.permute.xlu0 %1107
      %1109 = vrot.lane.b32.xlu0 %v808, 16
      %v1110 = vpop.permute.xlu0 %1109
      %1111 = vrot.lane.b32.xlu0 %v809, 16
      %v1112 = vpop.permute.xlu0 %1111
      %1113 = vrot.lane.b32.xlu0 %v810, 16
      %v1114 = vpop.permute.xlu0 %1113
      %1115 = vrot.lane.b32.xlu0 %v811, 16
      %v1116 = vpop.permute.xlu0 %1115
      %1117 = vrot.lane.b32.xlu0 %v812, 16
      %v1118 = vpop.permute.xlu0 %1117
      %1119 = vrot.lane.b32.xlu0 %v813, 16
      %v1120 = vpop.permute.xlu0 %1119
      %1121 = vrot.lane.b32.xlu0 %v814, 16
      %v1122 = vpop.permute.xlu0 %1121
      %1123 = vrot.lane.b32.xlu0 %v815, 16
      %v1124 = vpop.permute.xlu0 %1123
      %1125 = vrot.lane.b32.xlu0 %v816, 16
      %v1126 = vpop.permute.xlu0 %1125
      %1127 = vrot.lane.b32.xlu0 %v817, 16
      %v1128 = vpop.permute.xlu0 %1127
      %1129 = vrot.lane.b32.xlu0 %v818, 16
      %v1130 = vpop.permute.xlu0 %1129
      %1131 = vrot.lane.b32.xlu0 %v819, 16
      %v1132 = vpop.permute.xlu0 %1131
      %1133 = vrot.lane.b32.xlu0 %v820, 16
      %v1134 = vpop.permute.xlu0 %1133
      %1135 = vrot.lane.b32.xlu0 %v821, 16
      %v1136 = vpop.permute.xlu0 %1135
      %1137 = vrot.lane.b32.xlu0 %v822, 16
      %v1138 = vpop.permute.xlu0 %1137
      %1139 = vrot.lane.b32.xlu0 %v823, 16
      %v1140 = vpop.permute.xlu0 %1139
      %1141 = vrot.lane.b32.xlu0 %v824, 16
      %v1142 = vpop.permute.xlu0 %1141
      %1143 = vrot.lane.b32.xlu0 %v825, 16
      %v1144 = vpop.permute.xlu0 %1143
      %1145 = vrot.lane.b32.xlu0 %v826, 16
      %v1146 = vpop.permute.xlu0 %1145
      %vm1179 = vcmask 64512
      %v1180 = vsel %vm1179, %v669, %v860
      %v1181 = vsel %vm1179, %v672, %v862
      %v1182 = vsel %vm1179, %v677, %v864
      %v1183 = vsel %vm1179, %v680, %v866
      %v1184 = vsel %vm1179, %v685, %v868
      %v1185 = vsel %vm1179, %v688, %v870
      %v1186 = vsel %vm1179, %v693, %v872
      %v1187 = vsel %vm1179, %v696, %v874
      %v1188 = vsel %vm1179, %v701, %v876
      %v1189 = vsel %vm1179, %v704, %v878
      %v1190 = vsel %vm1179, %v709, %v880
      %v1191 = vsel %vm1179, %v712, %v882
      %v1192 = vsel %vm1179, %v717, %v884
      %v1193 = vsel %vm1179, %v720, %v886
      %v1194 = vsel %vm1179, %v725, %v888
      %v1195 = vsel %vm1179, %v728, %v890
      %v1196 = vsel %vm1179, %v733, %v892
      %v1197 = vsel %vm1179, %v736, %v894
      %v1198 = vsel %vm1179, %v741, %v896
      %v1199 = vsel %vm1179, %v744, %v898
      %v1200 = vsel %vm1179, %v749, %v900
      %v1201 = vsel %vm1179, %v752, %v902
      %v1202 = vsel %vm1179, %v757, %v904
      %v1203 = vsel %vm1179, %v760, %v906
      %v1204 = vsel %vm1179, %v765, %v908
      %v1205 = vsel %vm1179, %v768, %v910
      %v1206 = vsel %vm1179, %v773, %v912
      %v1207 = vsel %vm1179, %v776, %v914
      %v1208 = vsel %vm1179, %v781, %v916
      %v1209 = vsel %vm1179, %v784, %v918
      %v1210 = vsel %vm1179, %v789, %v920
      %v1211 = vsel %vm1179, %v792, %v922
      %vm1212 = vcmask 130048
      %v1213 = vsel %vm1212, %v1180, %v988
      %v1214 = vsel %vm1212, %v1181, %v990
      %v1215 = vsel %vm1212, %v1182, %v992
      %v1216 = vsel %vm1212, %v1183, %v994
      %v1217 = vsel %vm1212, %v1184, %v996
      %v1218 = vsel %vm1212, %v1185, %v998
      %v1219 = vsel %vm1212, %v1186, %v1000
      %v1220 = vsel %vm1212, %v1187, %v1002
      %v1221 = vsel %vm1212, %v1188, %v1004
      %v1222 = vsel %vm1212, %v1189, %v1006
      %v1223 = vsel %vm1212, %v1190, %v1008
      %v1224 = vsel %vm1212, %v1191, %v1010
      %v1225 = vsel %vm1212, %v1192, %v1012
      %v1226 = vsel %vm1212, %v1193, %v1014
      %v1227 = vsel %vm1212, %v1194, %v1016
      %v1228 = vsel %vm1212, %v1195, %v1018
      %v1229 = vsel %vm1212, %v1196, %v1020
      %v1230 = vsel %vm1212, %v1197, %v1022
      %v1231 = vsel %vm1212, %v1198, %v1024
      %v1232 = vsel %vm1212, %v1199, %v1026
      %v1233 = vsel %vm1212, %v1200, %v1028
      %v1234 = vsel %vm1212, %v1201, %v1030
      %v1235 = vsel %vm1212, %v1202, %v1032
      %v1236 = vsel %vm1212, %v1203, %v1034
      %v1237 = vsel %vm1212, %v1204, %v1036
      %v1238 = vsel %vm1212, %v1205, %v1038
      %v1239 = vsel %vm1212, %v1206, %v1040
      %v1240 = vsel %vm1212, %v1207, %v1042
      %v1241 = vsel %vm1212, %v1208, %v1044
      %v1242 = vsel %vm1212, %v1209, %v1046
      %v1243 = vsel %vm1212, %v1210, %v1048
      %v1244 = vsel %vm1212, %v1211, %v1050
      %vm1245 = vcmask 195584
      %v1246 = vsel %vm1245, %v1213, %v1084
      %v1247 = vsel %vm1245, %v1214, %v1086
      %v1248 = vsel %vm1245, %v1215, %v1088
      %v1249 = vsel %vm1245, %v1216, %v1090
      %v1250 = vsel %vm1245, %v1217, %v1092
      %v1251 = vsel %vm1245, %v1218, %v1094
      %v1252 = vsel %vm1245, %v1219, %v1096
      %v1253 = vsel %vm1245, %v1220, %v1098
      %v1254 = vsel %vm1245, %v1221, %v1100
      %v1255 = vsel %vm1245, %v1222, %v1102
      %v1256 = vsel %vm1245, %v1223, %v1104
      %v1257 = vsel %vm1245, %v1224, %v1106
      %v1258 = vsel %vm1245, %v1225, %v1108
      %v1259 = vsel %vm1245, %v1226, %v1110
      %v1260 = vsel %vm1245, %v1227, %v1112
      %v1261 = vsel %vm1245, %v1228, %v1114
      %v1262 = vsel %vm1245, %v1229, %v1116
      %v1263 = vsel %vm1245, %v1230, %v1118
      %v1264 = vsel %vm1245, %v1231, %v1120
      %v1265 = vsel %vm1245, %v1232, %v1122
      %v1266 = vsel %vm1245, %v1233, %v1124
      %v1267 = vsel %vm1245, %v1234, %v1126
      %v1268 = vsel %vm1245, %v1235, %v1128
      %v1269 = vsel %vm1245, %v1236, %v1130
      %v1270 = vsel %vm1245, %v1237, %v1132
      %v1271 = vsel %vm1245, %v1238, %v1134
      %v1272 = vsel %vm1245, %v1239, %v1136
      %v1273 = vsel %vm1245, %v1240, %v1138
      %v1274 = vsel %vm1245, %v1241, %v1140
      %v1275 = vsel %vm1245, %v1242, %v1142
      %v1276 = vsel %vm1245, %v1243, %v1144
      %v1277 = vsel %vm1245, %v1244, %v1146
      %vm1278 = vcmask 261120
      %1279 = vst.msk [vmem:[%s283] sm:$0xff] %vm1278, %v1246
      %1280 = vst.msk [vmem:[%s283 + $0x8] sm:$0xff] %vm1278, %v1247
      %1281 = vst.msk [vmem:[%s283 + $0x20] sm:$0xff] %vm1278, %v1248
      %1282 = vst.msk [vmem:[%s283 + $0x28] sm:$0xff] %vm1278, %v1249
      %1283 = vst.msk [vmem:[%s283 + $0x40] sm:$0xff] %vm1278, %v1250
      %1284 = vst.msk [vmem:[%s283 + $0x48] sm:$0xff] %vm1278, %v1251
      %1285 = vst.msk [vmem:[%s283 + $0x60] sm:$0xff] %vm1278, %v1252
      %1286 = vst.msk [vmem:[%s283 + $0x68] sm:$0xff] %vm1278, %v1253
      %1287 = vst.msk [vmem:[%s283 + $0x80] sm:$0xff] %vm1278, %v1254
      %1288 = vst.msk [vmem:[%s283 + $0x88] sm:$0xff] %vm1278, %v1255
      %1289 = vst.msk [vmem:[%s283 + $0xa0] sm:$0xff] %vm1278, %v1256
      %1290 = vst.msk [vmem:[%s283 + $0xa8] sm:$0xff] %vm1278, %v1257
      %1291 = vst.msk [vmem:[%s283 + $0xc0] sm:$0xff] %vm1278, %v1258
      %1292 = vst.msk [vmem:[%s283 + $0xc8] sm:$0xff] %vm1278, %v1259
      %1293 = vst.msk [vmem:[%s283 + $0xe0] sm:$0xff] %vm1278, %v1260
      %1294 = vst.msk [vmem:[%s283 + $0xe8] sm:$0xff] %vm1278, %v1261
      %1295 = vst.msk [vmem:[%s283 + $0x100] sm:$0xff] %vm1278, %v1262
      %1296 = vst.msk [vmem:[%s283 + $0x108] sm:$0xff] %vm1278, %v1263
      %1297 = vst.msk [vmem:[%s283 + $0x120] sm:$0xff] %vm1278, %v1264
      %1298 = vst.msk [vmem:[%s283 + $0x128] sm:$0xff] %vm1278, %v1265
      %1299 = vst.msk [vmem:[%s283 + $0x140] sm:$0xff] %vm1278, %v1266
      %1300 = vst.msk [vmem:[%s283 + $0x148] sm:$0xff] %vm1278, %v1267
      %1301 = vst.msk [vmem:[%s283 + $0x160] sm:$0xff] %vm1278, %v1268
      %1302 = vst.msk [vmem:[%s283 + $0x168] sm:$0xff] %vm1278, %v1269
      %1303 = vst.msk [vmem:[%s283 + $0x180] sm:$0xff] %vm1278, %v1270
      %1304 = vst.msk [vmem:[%s283 + $0x188] sm:$0xff] %vm1278, %v1271
      %1305 = vst.msk [vmem:[%s283 + $0x1a0] sm:$0xff] %vm1278, %v1272
      %1306 = vst.msk [vmem:[%s283 + $0x1a8] sm:$0xff] %vm1278, %v1273
      %1307 = vst.msk [vmem:[%s283 + $0x1c0] sm:$0xff] %vm1278, %v1274
      %1308 = vst.msk [vmem:[%s283 + $0x1c8] sm:$0xff] %vm1278, %v1275
      %1309 = vst.msk [vmem:[%s283 + $0x1e0] sm:$0xff] %vm1278, %v1276
      %1310 = vst.msk [vmem:[%s283 + $0x1e8] sm:$0xff] %vm1278, %v1277
      %s1311 = scalar_lea.vmem %s276, 16
      %v1312 = vld [vmem:[%s1311] sm:$0xff]
      %v1313 = vld [vmem:[%s1311 + $0x8] sm:$0xff]
      %v1314 = vld [vmem:[%s1311 + $0x20] sm:$0xff]
      %v1315 = vld [vmem:[%s1311 + $0x28] sm:$0xff]
      %v1316 = vld [vmem:[%s1311 + $0x40] sm:$0xff]
      %v1317 = vld [vmem:[%s1311 + $0x48] sm:$0xff]
      %v1318 = vld [vmem:[%s1311 + $0x60] sm:$0xff]
      %v1319 = vld [vmem:[%s1311 + $0x68] sm:$0xff]
      %v1320 = vld [vmem:[%s1311 + $0x80] sm:$0xff]
      %v1321 = vld [vmem:[%s1311 + $0x88] sm:$0xff]
      %v1322 = vld [vmem:[%s1311 + $0xa0] sm:$0xff]
      %v1323 = vld [vmem:[%s1311 + $0xa8] sm:$0xff]
      %v1324 = vld [vmem:[%s1311 + $0xc0] sm:$0xff]
      %v1325 = vld [vmem:[%s1311 + $0xc8] sm:$0xff]
      %v1326 = vld [vmem:[%s1311 + $0xe0] sm:$0xff]
      %v1327 = vld [vmem:[%s1311 + $0xe8] sm:$0xff]
      %v1328 = vld [vmem:[%s1311 + $0x100] sm:$0xff]
      %v1329 = vld [vmem:[%s1311 + $0x108] sm:$0xff]
      %v1330 = vld [vmem:[%s1311 + $0x120] sm:$0xff]
      %v1331 = vld [vmem:[%s1311 + $0x128] sm:$0xff]
      %v1332 = vld [vmem:[%s1311 + $0x140] sm:$0xff]
      %v1333 = vld [vmem:[%s1311 + $0x148] sm:$0xff]
      %v1334 = vld [vmem:[%s1311 + $0x160] sm:$0xff]
      %v1335 = vld [vmem:[%s1311 + $0x168] sm:$0xff]
      %v1336 = vld [vmem:[%s1311 + $0x180] sm:$0xff]
      %v1337 = vld [vmem:[%s1311 + $0x188] sm:$0xff]
      %v1338 = vld [vmem:[%s1311 + $0x1a0] sm:$0xff]
      %v1339 = vld [vmem:[%s1311 + $0x1a8] sm:$0xff]
      %v1340 = vld [vmem:[%s1311 + $0x1c0] sm:$0xff]
      %v1341 = vld [vmem:[%s1311 + $0x1c8] sm:$0xff]
      %v1342 = vld [vmem:[%s1311 + $0x1e0] sm:$0xff]
      %v1343 = vld [vmem:[%s1311 + $0x1e8] sm:$0xff]
      %1344 = vrot.lane.b32.xlu0 %v669, 112
      %v1345 = vpop.permute.xlu0 %1344
      %1346 = vrot.lane.b32.xlu0 %v672, 112
      %v1347 = vpop.permute.xlu0 %1346
      %1348 = vrot.lane.b32.xlu0 %v677, 112
      %v1349 = vpop.permute.xlu0 %1348
      %1350 = vrot.lane.b32.xlu0 %v680, 112
      %v1351 = vpop.permute.xlu0 %1350
      %1352 = vrot.lane.b32.xlu0 %v685, 112
      %v1353 = vpop.permute.xlu0 %1352
      %1354 = vrot.lane.b32.xlu0 %v688, 112
      %v1355 = vpop.permute.xlu0 %1354
      %1356 = vrot.lane.b32.xlu0 %v693, 112
      %v1357 = vpop.permute.xlu0 %1356
      %1358 = vrot.lane.b32.xlu0 %v696, 112
      %v1359 = vpop.permute.xlu0 %1358
      %1360 = vrot.lane.b32.xlu0 %v701, 112
      %v1361 = vpop.permute.xlu0 %1360
      %1362 = vrot.lane.b32.xlu0 %v704, 112
      %v1363 = vpop.permute.xlu0 %1362
      %1364 = vrot.lane.b32.xlu0 %v709, 112
      %v1365 = vpop.permute.xlu0 %1364
      %1366 = vrot.lane.b32.xlu0 %v712, 112
      %v1367 = vpop.permute.xlu0 %1366
      %1368 = vrot.lane.b32.xlu0 %v717, 112
      %v1369 = vpop.permute.xlu0 %1368
      %1370 = vrot.lane.b32.xlu0 %v720, 112
      %v1371 = vpop.permute.xlu0 %1370
      %1372 = vrot.lane.b32.xlu0 %v725, 112
      %v1373 = vpop.permute.xlu0 %1372
      %1374 = vrot.lane.b32.xlu0 %v728, 112
      %v1375 = vpop.permute.xlu0 %1374
      %1376 = vrot.lane.b32.xlu0 %v733, 112
      %v1377 = vpop.permute.xlu0 %1376
      %1378 = vrot.lane.b32.xlu0 %v736, 112
      %v1379 = vpop.permute.xlu0 %1378
      %1380 = vrot.lane.b32.xlu0 %v741, 112
      %v1381 = vpop.permute.xlu0 %1380
      %1382 = vrot.lane.b32.xlu0 %v744, 112
      %v1383 = vpop.permute.xlu0 %1382
      %1384 = vrot.lane.b32.xlu0 %v749, 112
      %v1385 = vpop.permute.xlu0 %1384
      %1386 = vrot.lane.b32.xlu0 %v752, 112
      %v1387 = vpop.permute.xlu0 %1386
      %1388 = vrot.lane.b32.xlu0 %v757, 112
      %v1389 = vpop.permute.xlu0 %1388
      %1390 = vrot.lane.b32.xlu0 %v760, 112
      %v1391 = vpop.permute.xlu0 %1390
      %1392 = vrot.lane.b32.xlu0 %v765, 112
      %v1393 = vpop.permute.xlu0 %1392
      %1394 = vrot.lane.b32.xlu0 %v768, 112
      %v1395 = vpop.permute.xlu0 %1394
      %1396 = vrot.lane.b32.xlu0 %v773, 112
      %v1397 = vpop.permute.xlu0 %1396
      %1398 = vrot.lane.b32.xlu0 %v776, 112
      %v1399 = vpop.permute.xlu0 %1398
      %1400 = vrot.lane.b32.xlu0 %v781, 112
      %v1401 = vpop.permute.xlu0 %1400
      %1402 = vrot.lane.b32.xlu0 %v784, 112
      %v1403 = vpop.permute.xlu0 %1402
      %1404 = vrot.lane.b32.xlu0 %v789, 112
      %v1405 = vpop.permute.xlu0 %1404
      %1406 = vrot.lane.b32.xlu0 %v792, 112
      %v1407 = vpop.permute.xlu0 %1406
      %1472 = vrot.lane.b32.xlu0 %v1312, 8
      %v1473 = vpop.permute.xlu0 %1472
      %1474 = vrot.lane.b32.xlu0 %v1313, 8
      %v1475 = vpop.permute.xlu0 %1474
      %1476 = vrot.lane.b32.xlu0 %v1314, 8
      %v1477 = vpop.permute.xlu0 %1476
      %1478 = vrot.lane.b32.xlu0 %v1315, 8
      %v1479 = vpop.permute.xlu0 %1478
      %1480 = vrot.lane.b32.xlu0 %v1316, 8
      %v1481 = vpop.permute.xlu0 %1480
      %1482 = vrot.lane.b32.xlu0 %v1317, 8
      %v1483 = vpop.permute.xlu0 %1482
      %1484 = vrot.lane.b32.xlu0 %v1318, 8
      %v1485 = vpop.permute.xlu0 %1484
      %1486 = vrot.lane.b32.xlu0 %v1319, 8
      %v1487 = vpop.permute.xlu0 %1486
      %1488 = vrot.lane.b32.xlu0 %v1320, 8
      %v1489 = vpop.permute.xlu0 %1488
      %1490 = vrot.lane.b32.xlu0 %v1321, 8
      %v1491 = vpop.permute.xlu0 %1490
      %1492 = vrot.lane.b32.xlu0 %v1322, 8
      %v1493 = vpop.permute.xlu0 %1492
      %1494 = vrot.lane.b32.xlu0 %v1323, 8
      %v1495 = vpop.permute.xlu0 %1494
      %1496 = vrot.lane.b32.xlu0 %v1324, 8
      %v1497 = vpop.permute.xlu0 %1496
      %1498 = vrot.lane.b32.xlu0 %v1325, 8
      %v1499 = vpop.permute.xlu0 %1498
      %1500 = vrot.lane.b32.xlu0 %v1326, 8
      %v1501 = vpop.permute.xlu0 %1500
      %1502 = vrot.lane.b32.xlu0 %v1327, 8
      %v1503 = vpop.permute.xlu0 %1502
      %1504 = vrot.lane.b32.xlu0 %v1328, 8
      %v1505 = vpop.permute.xlu0 %1504
      %1506 = vrot.lane.b32.xlu0 %v1329, 8
      %v1507 = vpop.permute.xlu0 %1506
      %1508 = vrot.lane.b32.xlu0 %v1330, 8
      %v1509 = vpop.permute.xlu0 %1508
      %1510 = vrot.lane.b32.xlu0 %v1331, 8
      %v1511 = vpop.permute.xlu0 %1510
      %1512 = vrot.lane.b32.xlu0 %v1332, 8
      %v1513 = vpop.permute.xlu0 %1512
      %1514 = vrot.lane.b32.xlu0 %v1333, 8
      %v1515 = vpop.permute.xlu0 %1514
      %1516 = vrot.lane.b32.xlu0 %v1334, 8
      %v1517 = vpop.permute.xlu0 %1516
      %1518 = vrot.lane.b32.xlu0 %v1335, 8
      %v1519 = vpop.permute.xlu0 %1518
      %1520 = vrot.lane.b32.xlu0 %v1336, 8
      %v1521 = vpop.permute.xlu0 %1520
      %1522 = vrot.lane.b32.xlu0 %v1337, 8
      %v1523 = vpop.permute.xlu0 %1522
      %1524 = vrot.lane.b32.xlu0 %v1338, 8
      %v1525 = vpop.permute.xlu0 %1524
      %1526 = vrot.lane.b32.xlu0 %v1339, 8
      %v1527 = vpop.permute.xlu0 %1526
      %1528 = vrot.lane.b32.xlu0 %v1340, 8
      %v1529 = vpop.permute.xlu0 %1528
      %1530 = vrot.lane.b32.xlu0 %v1341, 8
      %v1531 = vpop.permute.xlu0 %1530
      %1532 = vrot.lane.b32.xlu0 %v1342, 8
      %v1533 = vpop.permute.xlu0 %1532
      %1534 = vrot.lane.b32.xlu0 %v1343, 8
      %v1535 = vpop.permute.xlu0 %1534
      %1568 = vrot.lane.b32.xlu0 %v669, 120
      %v1569 = vpop.permute.xlu0 %1568
      %1570 = vrot.lane.b32.xlu0 %v672, 120
      %v1571 = vpop.permute.xlu0 %1570
      %1572 = vrot.lane.b32.xlu0 %v677, 120
      %v1573 = vpop.permute.xlu0 %1572
      %1574 = vrot.lane.b32.xlu0 %v680, 120
      %v1575 = vpop.permute.xlu0 %1574
      %1576 = vrot.lane.b32.xlu0 %v685, 120
      %v1577 = vpop.permute.xlu0 %1576
      %1578 = vrot.lane.b32.xlu0 %v688, 120
      %v1579 = vpop.permute.xlu0 %1578
      %1580 = vrot.lane.b32.xlu0 %v693, 120
      %v1581 = vpop.permute.xlu0 %1580
      %1582 = vrot.lane.b32.xlu0 %v696, 120
      %v1583 = vpop.permute.xlu0 %1582
      %1584 = vrot.lane.b32.xlu0 %v701, 120
      %v1585 = vpop.permute.xlu0 %1584
      %1586 = vrot.lane.b32.xlu0 %v704, 120
      %v1587 = vpop.permute.xlu0 %1586
      %1588 = vrot.lane.b32.xlu0 %v709, 120
      %v1589 = vpop.permute.xlu0 %1588
      %1590 = vrot.lane.b32.xlu0 %v712, 120
      %v1591 = vpop.permute.xlu0 %1590
      %1592 = vrot.lane.b32.xlu0 %v717, 120
      %v1593 = vpop.permute.xlu0 %1592
      %1594 = vrot.lane.b32.xlu0 %v720, 120
      %v1595 = vpop.permute.xlu0 %1594
      %1596 = vrot.lane.b32.xlu0 %v725, 120
      %v1597 = vpop.permute.xlu0 %1596
      %1598 = vrot.lane.b32.xlu0 %v728, 120
      %v1599 = vpop.permute.xlu0 %1598
      %1600 = vrot.lane.b32.xlu0 %v733, 120
      %v1601 = vpop.permute.xlu0 %1600
      %1602 = vrot.lane.b32.xlu0 %v736, 120
      %v1603 = vpop.permute.xlu0 %1602
      %1604 = vrot.lane.b32.xlu0 %v741, 120
      %v1605 = vpop.permute.xlu0 %1604
      %1606 = vrot.lane.b32.xlu0 %v744, 120
      %v1607 = vpop.permute.xlu0 %1606
      %1608 = vrot.lane.b32.xlu0 %v749, 120
      %v1609 = vpop.permute.xlu0 %1608
      %1610 = vrot.lane.b32.xlu0 %v752, 120
      %v1611 = vpop.permute.xlu0 %1610
      %1612 = vrot.lane.b32.xlu0 %v757, 120
      %v1613 = vpop.permute.xlu0 %1612
      %1614 = vrot.lane.b32.xlu0 %v760, 120
      %v1615 = vpop.permute.xlu0 %1614
      %1616 = vrot.lane.b32.xlu0 %v765, 120
      %v1617 = vpop.permute.xlu0 %1616
      %1618 = vrot.lane.b32.xlu0 %v768, 120
      %v1619 = vpop.permute.xlu0 %1618
      %1620 = vrot.lane.b32.xlu0 %v773, 120
      %v1621 = vpop.permute.xlu0 %1620
      %1622 = vrot.lane.b32.xlu0 %v776, 120
      %v1623 = vpop.permute.xlu0 %1622
      %1624 = vrot.lane.b32.xlu0 %v781, 120
      %v1625 = vpop.permute.xlu0 %1624
      %1626 = vrot.lane.b32.xlu0 %v784, 120
      %v1627 = vpop.permute.xlu0 %1626
      %1628 = vrot.lane.b32.xlu0 %v789, 120
      %v1629 = vpop.permute.xlu0 %1628
      %1630 = vrot.lane.b32.xlu0 %v792, 120
      %v1631 = vpop.permute.xlu0 %1630
      %1664 = vrot.lane.b32.xlu0 %v1312, 16
      %v1665 = vpop.permute.xlu0 %1664
      %1666 = vrot.lane.b32.xlu0 %v1313, 16
      %v1667 = vpop.permute.xlu0 %1666
      %1668 = vrot.lane.b32.xlu0 %v1314, 16
      %v1669 = vpop.permute.xlu0 %1668
      %1670 = vrot.lane.b32.xlu0 %v1315, 16
      %v1671 = vpop.permute.xlu0 %1670
      %1672 = vrot.lane.b32.xlu0 %v1316, 16
      %v1673 = vpop.permute.xlu0 %1672
      %1674 = vrot.lane.b32.xlu0 %v1317, 16
      %v1675 = vpop.permute.xlu0 %1674
      %1676 = vrot.lane.b32.xlu0 %v1318, 16
      %v1677 = vpop.permute.xlu0 %1676
      %1678 = vrot.lane.b32.xlu0 %v1319, 16
      %v1679 = vpop.permute.xlu0 %1678
      %1680 = vrot.lane.b32.xlu0 %v1320, 16
      %v1681 = vpop.permute.xlu0 %1680
      %1682 = vrot.lane.b32.xlu0 %v1321, 16
      %v1683 = vpop.permute.xlu0 %1682
      %1684 = vrot.lane.b32.xlu0 %v1322, 16
      %v1685 = vpop.permute.xlu0 %1684
      %1686 = vrot.lane.b32.xlu0 %v1323, 16
      %v1687 = vpop.permute.xlu0 %1686
      %1688 = vrot.lane.b32.xlu0 %v1324, 16
      %v1689 = vpop.permute.xlu0 %1688
      %1690 = vrot.lane.b32.xlu0 %v1325, 16
      %v1691 = vpop.permute.xlu0 %1690
      %1692 = vrot.lane.b32.xlu0 %v1326, 16
      %v1693 = vpop.permute.xlu0 %1692
      %1694 = vrot.lane.b32.xlu0 %v1327, 16
      %v1695 = vpop.permute.xlu0 %1694
      %1696 = vrot.lane.b32.xlu0 %v1328, 16
      %v1697 = vpop.permute.xlu0 %1696
      %1698 = vrot.lane.b32.xlu0 %v1329, 16
      %v1699 = vpop.permute.xlu0 %1698
      %1700 = vrot.lane.b32.xlu0 %v1330, 16
      %v1701 = vpop.permute.xlu0 %1700
      %1702 = vrot.lane.b32.xlu0 %v1331, 16
      %v1703 = vpop.permute.xlu0 %1702
      %1704 = vrot.lane.b32.xlu0 %v1332, 16
      %v1705 = vpop.permute.xlu0 %1704
      %1706 = vrot.lane.b32.xlu0 %v1333, 16
      %v1707 = vpop.permute.xlu0 %1706
      %1708 = vrot.lane.b32.xlu0 %v1334, 16
      %v1709 = vpop.permute.xlu0 %1708
      %1710 = vrot.lane.b32.xlu0 %v1335, 16
      %v1711 = vpop.permute.xlu0 %1710
      %1712 = vrot.lane.b32.xlu0 %v1336, 16
      %v1713 = vpop.permute.xlu0 %1712
      %1714 = vrot.lane.b32.xlu0 %v1337, 16
      %v1715 = vpop.permute.xlu0 %1714
      %1716 = vrot.lane.b32.xlu0 %v1338, 16
      %v1717 = vpop.permute.xlu0 %1716
      %1718 = vrot.lane.b32.xlu0 %v1339, 16
      %v1719 = vpop.permute.xlu0 %1718
      %1720 = vrot.lane.b32.xlu0 %v1340, 16
      %v1721 = vpop.permute.xlu0 %1720
      %1722 = vrot.lane.b32.xlu0 %v1341, 16
      %v1723 = vpop.permute.xlu0 %1722
      %1724 = vrot.lane.b32.xlu0 %v1342, 16
      %v1725 = vpop.permute.xlu0 %1724
      %1726 = vrot.lane.b32.xlu0 %v1343, 16
      %v1727 = vpop.permute.xlu0 %1726
      %v1760 = vsel %vm1179, %v1345, %v1473
      %v1761 = vsel %vm1179, %v1347, %v1475
      %v1762 = vsel %vm1179, %v1349, %v1477
      %v1763 = vsel %vm1179, %v1351, %v1479
      %v1764 = vsel %vm1179, %v1353, %v1481
      %v1765 = vsel %vm1179, %v1355, %v1483
      %v1766 = vsel %vm1179, %v1357, %v1485
      %v1767 = vsel %vm1179, %v1359, %v1487
      %v1768 = vsel %vm1179, %v1361, %v1489
      %v1769 = vsel %vm1179, %v1363, %v1491
      %v1770 = vsel %vm1179, %v1365, %v1493
      %v1771 = vsel %vm1179, %v1367, %v1495
      %v1772 = vsel %vm1179, %v1369, %v1497
      %v1773 = vsel %vm1179, %v1371, %v1499
      %v1774 = vsel %vm1179, %v1373, %v1501
      %v1775 = vsel %vm1179, %v1375, %v1503
      %v1776 = vsel %vm1179, %v1377, %v1505
      %v1777 = vsel %vm1179, %v1379, %v1507
      %v1778 = vsel %vm1179, %v1381, %v1509
      %v1779 = vsel %vm1179, %v1383, %v1511
      %v1780 = vsel %vm1179, %v1385, %v1513
      %v1781 = vsel %vm1179, %v1387, %v1515
      %v1782 = vsel %vm1179, %v1389, %v1517
      %v1783 = vsel %vm1179, %v1391, %v1519
      %v1784 = vsel %vm1179, %v1393, %v1521
      %v1785 = vsel %vm1179, %v1395, %v1523
      %v1786 = vsel %vm1179, %v1397, %v1525
      %v1787 = vsel %vm1179, %v1399, %v1527
      %v1788 = vsel %vm1179, %v1401, %v1529
      %v1789 = vsel %vm1179, %v1403, %v1531
      %v1790 = vsel %vm1179, %v1405, %v1533
      %v1791 = vsel %vm1179, %v1407, %v1535
      %v1792 = vsel %vm1212, %v1760, %v1569
      %v1793 = vsel %vm1212, %v1761, %v1571
      %v1794 = vsel %vm1212, %v1762, %v1573
      %v1795 = vsel %vm1212, %v1763, %v1575
      %v1796 = vsel %vm1212, %v1764, %v1577
      %v1797 = vsel %vm1212, %v1765, %v1579
      %v1798 = vsel %vm1212, %v1766, %v1581
      %v1799 = vsel %vm1212, %v1767, %v1583
      %v1800 = vsel %vm1212, %v1768, %v1585
      %v1801 = vsel %vm1212, %v1769, %v1587
      %v1802 = vsel %vm1212, %v1770, %v1589
      %v1803 = vsel %vm1212, %v1771, %v1591
      %v1804 = vsel %vm1212, %v1772, %v1593
      %v1805 = vsel %vm1212, %v1773, %v1595
      %v1806 = vsel %vm1212, %v1774, %v1597
      %v1807 = vsel %vm1212, %v1775, %v1599
      %v1808 = vsel %vm1212, %v1776, %v1601
      %v1809 = vsel %vm1212, %v1777, %v1603
      %v1810 = vsel %vm1212, %v1778, %v1605
      %v1811 = vsel %vm1212, %v1779, %v1607
      %v1812 = vsel %vm1212, %v1780, %v1609
      %v1813 = vsel %vm1212, %v1781, %v1611
      %v1814 = vsel %vm1212, %v1782, %v1613
      %v1815 = vsel %vm1212, %v1783, %v1615
      %v1816 = vsel %vm1212, %v1784, %v1617
      %v1817 = vsel %vm1212, %v1785, %v1619
      %v1818 = vsel %vm1212, %v1786, %v1621
      %v1819 = vsel %vm1212, %v1787, %v1623
      %v1820 = vsel %vm1212, %v1788, %v1625
      %v1821 = vsel %vm1212, %v1789, %v1627
      %v1822 = vsel %vm1212, %v1790, %v1629
      %v1823 = vsel %vm1212, %v1791, %v1631
      %v1824 = vsel %vm1245, %v1792, %v1665
      %v1825 = vsel %vm1245, %v1793, %v1667
      %v1826 = vsel %vm1245, %v1794, %v1669
      %v1827 = vsel %vm1245, %v1795, %v1671
      %v1828 = vsel %vm1245, %v1796, %v1673
      %v1829 = vsel %vm1245, %v1797, %v1675
      %v1830 = vsel %vm1245, %v1798, %v1677
      %v1831 = vsel %vm1245, %v1799, %v1679
      %v1832 = vsel %vm1245, %v1800, %v1681
      %v1833 = vsel %vm1245, %v1801, %v1683
      %v1834 = vsel %vm1245, %v1802, %v1685
      %v1835 = vsel %vm1245, %v1803, %v1687
      %v1836 = vsel %vm1245, %v1804, %v1689
      %v1837 = vsel %vm1245, %v1805, %v1691
      %v1838 = vsel %vm1245, %v1806, %v1693
      %v1839 = vsel %vm1245, %v1807, %v1695
      %v1840 = vsel %vm1245, %v1808, %v1697
      %v1841 = vsel %vm1245, %v1809, %v1699
      %v1842 = vsel %vm1245, %v1810, %v1701
      %v1843 = vsel %vm1245, %v1811, %v1703
      %v1844 = vsel %vm1245, %v1812, %v1705
      %v1845 = vsel %vm1245, %v1813, %v1707
      %v1846 = vsel %vm1245, %v1814, %v1709
      %v1847 = vsel %vm1245, %v1815, %v1711
      %v1848 = vsel %vm1245, %v1816, %v1713
      %v1849 = vsel %vm1245, %v1817, %v1715
      %v1850 = vsel %vm1245, %v1818, %v1717
      %v1851 = vsel %vm1245, %v1819, %v1719
      %v1852 = vsel %vm1245, %v1820, %v1721
      %v1853 = vsel %vm1245, %v1821, %v1723
      %v1854 = vsel %vm1245, %v1822, %v1725
      %v1855 = vsel %vm1245, %v1823, %v1727
      %s1856 = scalar_lea.vmem %s283, 16
      %1857 = vst.msk [vmem:[%s1856] sm:$0xff] %vm1278, %v1824
      %1858 = vst.msk [vmem:[%s1856 + $0x8] sm:$0xff] %vm1278, %v1825
      %1859 = vst.msk [vmem:[%s1856 + $0x20] sm:$0xff] %vm1278, %v1826
      %1860 = vst.msk [vmem:[%s1856 + $0x28] sm:$0xff] %vm1278, %v1827
      %1861 = vst.msk [vmem:[%s1856 + $0x40] sm:$0xff] %vm1278, %v1828
      %1862 = vst.msk [vmem:[%s1856 + $0x48] sm:$0xff] %vm1278, %v1829
      %1863 = vst.msk [vmem:[%s1856 + $0x60] sm:$0xff] %vm1278, %v1830
      %1864 = vst.msk [vmem:[%s1856 + $0x68] sm:$0xff] %vm1278, %v1831
      %1865 = vst.msk [vmem:[%s1856 + $0x80] sm:$0xff] %vm1278, %v1832
      %1866 = vst.msk [vmem:[%s1856 + $0x88] sm:$0xff] %vm1278, %v1833
      %1867 = vst.msk [vmem:[%s1856 + $0xa0] sm:$0xff] %vm1278, %v1834
      %1868 = vst.msk [vmem:[%s1856 + $0xa8] sm:$0xff] %vm1278, %v1835
      %1869 = vst.msk [vmem:[%s1856 + $0xc0] sm:$0xff] %vm1278, %v1836
      %1870 = vst.msk [vmem:[%s1856 + $0xc8] sm:$0xff] %vm1278, %v1837
      %1871 = vst.msk [vmem:[%s1856 + $0xe0] sm:$0xff] %vm1278, %v1838
      %1872 = vst.msk [vmem:[%s1856 + $0xe8] sm:$0xff] %vm1278, %v1839
      %1873 = vst.msk [vmem:[%s1856 + $0x100] sm:$0xff] %vm1278, %v1840
      %1874 = vst.msk [vmem:[%s1856 + $0x108] sm:$0xff] %vm1278, %v1841
      %1875 = vst.msk [vmem:[%s1856 + $0x120] sm:$0xff] %vm1278, %v1842
      %1876 = vst.msk [vmem:[%s1856 + $0x128] sm:$0xff] %vm1278, %v1843
      %1877 = vst.msk [vmem:[%s1856 + $0x140] sm:$0xff] %vm1278, %v1844
      %1878 = vst.msk [vmem:[%s1856 + $0x148] sm:$0xff] %vm1278, %v1845
      %1879 = vst.msk [vmem:[%s1856 + $0x160] sm:$0xff] %vm1278, %v1846
      %1880 = vst.msk [vmem:[%s1856 + $0x168] sm:$0xff] %vm1278, %v1847
      %1881 = vst.msk [vmem:[%s1856 + $0x180] sm:$0xff] %vm1278, %v1848
      %1882 = vst.msk [vmem:[%s1856 + $0x188] sm:$0xff] %vm1278, %v1849
      %1883 = vst.msk [vmem:[%s1856 + $0x1a0] sm:$0xff] %vm1278, %v1850
      %1884 = vst.msk [vmem:[%s1856 + $0x1a8] sm:$0xff] %vm1278, %v1851
      %1885 = vst.msk [vmem:[%s1856 + $0x1c0] sm:$0xff] %vm1278, %v1852
      %1886 = vst.msk [vmem:[%s1856 + $0x1c8] sm:$0xff] %vm1278, %v1853
      %1887 = vst.msk [vmem:[%s1856 + $0x1e0] sm:$0xff] %vm1278, %v1854
      %1888 = vst.msk [vmem:[%s1856 + $0x1e8] sm:$0xff] %vm1278, %v1855
      %s1889 = smul.u32 16, %s17
      %p1890 = scmp.lt.s32.totalorder %s1889, 31
      %s1891 = scalar_select %p1890, %s1889, 31
      %s1892 = smul.addr %s1891, 4
      %s1893 = smul.addr %s1892, 8
      %s1894 = scalar_lea.vmem %s6, %s1893
      // Predicated region
      $region45: #{upsample_layer_forward_nhwc.3} parent=43 // pred_check
        %p1895 = pneg %p171
      $region46: #{upsample_layer_forward_nhwc.3} parent=43 // pred_check_branch
        %1897 = sbr.rel (%p1895) target = $region48
      $region47: #{upsample_layer_forward_nhwc.3} parent=43 // pred_region
        %s1898 = smul.u32 16, %s17
      $region48: #{upsample_layer_forward_nhwc.3} parent=43 // pred_fallthru
        _
    $region44: #{upsample_layer_forward_nhwc.3} parent=5 // pred_fallthru
      _
    %p1899 = scmp.le.s32.totalorder 2, %s12
    // Predicated region
    $region49: #{upsample_layer_forward_nhwc.3} parent=5 // pred_check
      %p1900 = pneg %p1899
    $region50: #{upsample_layer_forward_nhwc.3} parent=5 // pred_check_branch
      %1902 = sbr.rel (%p1900) target = $region52
    $region51: #{upsample_layer_forward_nhwc.3} parent=5 // pred_region
      %s1903 = ssub.s32 %s12, 2
      // Predicated region
      $region53: #{upsample_layer_forward_nhwc.3} parent=51 // pred_check
        %p1904 = pneg %p177
      $region54: #{upsample_layer_forward_nhwc.3} parent=51 // pred_check_branch
        %1906 = sbr.rel (%p1904) target = $region56
      $region55: #{upsample_layer_forward_nhwc.3} parent=51 // pred_region
        %s1907 = smul.u32 16, %s18
        %p1908 = scmp.lt.s32.totalorder %s1907, 31
        %s1909 = scalar_select %p1908, %s1907, 31
        %s1910 = smul.addr %s1909, 4
        %s1911 = smul.addr %s1910, 8
        %s1912 = scalar_lea.vmem %s6, %s1911
      $region56: #{upsample_layer_forward_nhwc.3} parent=51 // pred_fallthru
        _
    $region52: #{upsample_layer_forward_nhwc.3} parent=5 // pred_fallthru
      _
  $region6: #{upsample_layer_forward_nhwc.3} parent=0 // loop_footer
    %s16 = sadd.s32 1, %s12
  $region7: #{upsample_layer_forward_nhwc.3} parent=0 // loop_footer_branch
    %11 = sbr.rel target = $region3
  $region8: #{upsample_layer_forward_nhwc.3} parent=0 // loop_exit
    _

</llo_original>
